<compile_context>
chip_gen: v5e
topology: v5e:2x2
jax: 0.10.0
libtpu: 0.0.40
codegen_flags: <defaults>
</compile_context>

<pallas_src>
import jax
import jax.numpy as jnp
from jax.experimental import pallas as pl
from jax.experimental.pallas import tpu as pltpu

EPS = 1e-9
BN_EPS = 1e-5


def encoder_b_kernel(x_ref, w1_ref, bn_ref, w2q_ref, w3_ref, b3_ref, out_ref):
    bn = bn_ref[...]  # [4, 512] f32 rows: g1, be1, g2, be2

    # ---- fc1 (bias cancelled by train-mode BN) -> BN1 (batch stats) -> ReLU ----
    x = x_ref[...].astype(jnp.bfloat16)
    h = jnp.dot(x, w1_ref[...], preferred_element_type=jnp.float32)
    mean1 = jnp.mean(h, axis=0, keepdims=True)
    var1 = jnp.maximum(jnp.mean(h * h, axis=0, keepdims=True) - mean1 * mean1, 0.0)
    scale1 = bn[0:1, :] * jax.lax.rsqrt(var1 + BN_EPS)
    shift1 = bn[1:2, :] - mean1 * scale1
    h = jnp.maximum(h * scale1 + shift1, 0.0)

    # ---- fc2 (int8-stored weight; per-column quant scale exactly absorbed by
    #      the following train-mode BN) -> BN2 -> ReLU ----
    w2 = w2q_ref[...].astype(jnp.bfloat16)  # VPU widen; portable (no int8 MXU needed)
    h = jnp.dot(h.astype(jnp.bfloat16), w2, preferred_element_type=jnp.float32)
    mean2 = jnp.mean(h, axis=0, keepdims=True)
    var2 = jnp.maximum(jnp.mean(h * h, axis=0, keepdims=True) - mean2 * mean2, 0.0)
    scale2 = bn[2:3, :] * jax.lax.rsqrt(var2 + BN_EPS)
    shift2 = bn[3:4, :] - mean2 * scale2
    h = jnp.maximum(h * scale2 + shift2, 0.0)

    # ---- fused heads: [mu | logvar] in one matmul, one lane-dense-ish store ----
    y = jnp.dot(h.astype(jnp.bfloat16), w3_ref[...],
                preferred_element_type=jnp.float32) + b3_ref[...]
    two_z = y.shape[-1]
    z = two_z // 2
    lane = jax.lax.broadcasted_iota(jnp.int32, y.shape, dimension=1)
    # first half: mu (identity); second half: std = sqrt(exp(logvar) + EPS)
    out_ref[...] = jnp.where(lane < z, y, jnp.sqrt(jnp.exp(y) + EPS))


def encoder_b_forward(attributes, params):
    """attributes: [B, num_attr] float32. Returns (mu, std), each [1, B, zShared_dim]."""
    B, num_attr = attributes.shape
    hidden = params["w1"].shape[1]
    two_z = params["w3"].shape[1]
    z_dim = two_z // 2

    flops = 2 * B * (num_attr * hidden + hidden * hidden + hidden * two_z)
    bytes_accessed = (
        num_attr * hidden * 2          # w1 bf16
        + 4 * hidden * 4               # packed BN params f32
        + hidden * hidden * 1          # w2 int8
        + hidden * two_z * 2           # w3 bf16
        + two_z * 4                    # b3 f32
        + B * num_attr * 4             # x f32
        + B * two_z * 4                # out f32
    )
    transcendentals = 2 * hidden + 2 * B * two_z  # rsqrt + exp/sqrt

    vmem_spec = pl.BlockSpec(memory_space=pltpu.MemorySpace.VMEM)

    out = pl.pallas_call(
        encoder_b_kernel,
        out_shape=jax.ShapeDtypeStruct((B, two_z), jnp.float32),
        in_specs=[vmem_spec] * 6,
        out_specs=vmem_spec,
        cost_estimate=pl.CostEstimate(
            flops=flops,
            transcendentals=transcendentals,
            bytes_accessed=bytes_accessed,
        ),
    )(
        attributes,
        params["w1"], params["bn"], params["w2q"], params["w3"], params["b3"],
    )

    mu = out[:, :z_dim]
    std = out[:, z_dim:]
    # unsqueeze(0) as in the PyTorch forward
    return mu[None, ...], std[None, ...]


def _reference_forward(attributes, params):
    """Pure-JAX f32 reference mirroring the kernel math (same stored weights)."""
    bn = params["bn"]

    def bn_relu(h, g, be):
        mean = jnp.mean(h, axis=0, keepdims=True)
        var = jnp.maximum(jnp.mean(h * h, axis=0, keepdims=True) - mean * mean, 0.0)
        return jnp.maximum((h - mean) * (g * jax.lax.rsqrt(var + BN_EPS)) + be, 0.0)

    h = bn_relu(attributes @ params["w1"].astype(jnp.float32), bn[0:1], bn[1:2])
    h = bn_relu(h @ params["w2q"].astype(jnp.float32), bn[2:3], bn[3:4])
    y = h @ params["w3"].astype(jnp.float32) + params["b3"]
    z = y.shape[-1] // 2
    mu = y[:, :z]
    std = jnp.sqrt(jnp.exp(y[:, z:]) + EPS)
    return mu[None, ...], std[None, ...]


def init_params(seed, num_attr=18, zShared_dim=18, hidden=512):
    """Deterministic kaiming-style init (normal, std=sqrt(2/fan_in)); BN gamma=1, beta=0.

    Packing done once at init (not per forward call):
      * w1, w3 stored [in, out] in bfloat16 (f32 accumulation on the MXU).
      * w2 stored int8 with symmetric per-output-column quantization; the
        column scale is NOT stored — it is exactly absorbed by the train-mode
        BatchNorm (column-wise affine) that follows.
      * fc1/fc2 biases omitted: exactly cancelled by BN mean subtraction.
      * heads fc31/fc32 fused into one [hidden, 2*z] weight + [1, 2*z] bias.
      * BN params packed into one [4, hidden] array: rows g1, be1, g2, be2.
    """
    key = jax.random.PRNGKey(seed)
    k1, k2, k31, k32 = jax.random.split(key, 4)

    def kaiming(k, fan_in, fan_out):
        return jax.random.normal(k, (fan_in, fan_out), jnp.float32) * jnp.sqrt(2.0 / fan_in)

    def quantize_per_col_int8(w):
        amax = jnp.max(jnp.abs(w), axis=0, keepdims=True)
        amax = jnp.where(amax == 0.0, 1.0, amax)
        q = jnp.clip(jnp.round(w / amax * 127.0), -127.0, 127.0)
        return q.astype(jnp.int8)

    w1 = kaiming(k1, num_attr, hidden).astype(jnp.bfloat16)
    w2q = quantize_per_col_int8(kaiming(k2, hidden, hidden))
    w31 = kaiming(k31, hidden, zShared_dim)
    w32 = kaiming(k32, hidden, zShared_dim)
    w3 = jnp.concatenate([w31, w32], axis=1).astype(jnp.bfloat16)
    b3 = jnp.zeros((1, 2 * zShared_dim), jnp.float32)

    bn = jnp.stack([
        jnp.ones((hidden,), jnp.float32),    # g1
        jnp.zeros((hidden,), jnp.float32),   # be1
        jnp.ones((hidden,), jnp.float32),    # g2
        jnp.zeros((hidden,), jnp.float32),   # be2
    ], axis=0)

    return {"w1": w1, "bn": bn, "w2q": w2q, "w3": w3, "b3": b3}


if __name__ == "__main__":
    NUM_ATTR = 18
    Z_SHARED = 18
    BATCH = 8

    params = init_params(seed=0, num_attr=NUM_ATTR, zShared_dim=Z_SHARED)

    key = jax.random.PRNGKey(0)
    # CelebA attributes are 0/1 indicators
    attributes = jax.random.bernoulli(key, 0.5, (BATCH, NUM_ATTR)).astype(jnp.float32)

    mu, std = encoder_b_forward(attributes, params)
    jax.block_until_ready((mu, std))

    assert mu.shape == (1, BATCH, Z_SHARED)
    assert std.shape == (1, BATCH, Z_SHARED)
    assert bool(jnp.all(jnp.isfinite(mu)))
    assert bool(jnp.all(std > 0.0))

    # Sanity check against a pure-JAX f32 reference that uses the same stored
    # weights (isolates kernel correctness from the documented bf16/int8
    # approximation vs. the original f32 PyTorch weights).
    mu_ref, std_ref = _reference_forward(attributes, params)
    assert bool(jnp.allclose(mu, mu_ref, atol=0.2, rtol=0.2))
    assert bool(jnp.allclose(std, std_ref, atol=0.2, rtol=0.2))

    print("KERNEL_OK")
</pallas_src>

<mosaic_0001>
module attributes {stable_mosaic.version = 11 : i64} {
  func.func @encoder_b_kernel(%arg0: memref<8x18xf32, #tpu.memory_space<vmem>>, %arg1: memref<18x512xbf16, #tpu.memory_space<vmem>>, %arg2: memref<4x512xf32, #tpu.memory_space<vmem>>, %arg3: memref<512x512xi8, #tpu.memory_space<vmem>>, %arg4: memref<512x36xbf16, #tpu.memory_space<vmem>>, %arg5: memref<1x36xf32, #tpu.memory_space<vmem>>, %arg6: memref<8x36xf32, #tpu.memory_space<vmem>>) attributes {dimension_semantics = [], scalar_prefetch = 0 : i64, scratch_operands = 0 : i64, tpu.core_type = #tpu.core_type<tc>} {
    %c0 = arith.constant 0 : index
    %c0_0 = arith.constant 0 : index
    %0 = vector.load %arg2[%c0, %c0_0] : memref<4x512xf32, #tpu.memory_space<vmem>>, vector<4x512xf32>
    %c0_1 = arith.constant 0 : index
    %c0_2 = arith.constant 0 : index
    %1 = vector.load %arg0[%c0_1, %c0_2] : memref<8x18xf32, #tpu.memory_space<vmem>>, vector<8x18xf32>
    %2 = arith.truncf %1 : vector<8x18xf32> to vector<8x18xbf16>
    %c0_3 = arith.constant 0 : index
    %c0_4 = arith.constant 0 : index
    %3 = vector.load %arg1[%c0_3, %c0_4] : memref<18x512xbf16, #tpu.memory_space<vmem>>, vector<18x512xbf16>
    %cst = arith.constant dense<0.000000e+00> : vector<8x512xf32>
    %4 = tpu.matmul %2, %3, %cst {dimension_numbers = #tpu.dot_dimension_numbers<[1], [0], [0], [1], [0, 0, 1, 1], [], []>} : vector<8x18xbf16>, vector<18x512xbf16>, vector<8x512xf32> -> vector<8x512xf32>
    %cst_5 = arith.constant dense<0.000000e+00> : vector<512xf32>
    %5 = vector.multi_reduction <add>, %4, %cst_5 [0] : vector<8x512xf32> to vector<512xf32>
    %6 = vector.shape_cast %5 : vector<512xf32> to vector<1x512xf32>
    %cst_6 = arith.constant 8.000000e+00 : f32
    %7 = vector.broadcast %cst_6 : f32 to vector<1x512xf32>
    %8 = arith.divf %6, %7 : vector<1x512xf32>
    %9 = arith.mulf %4, %4 : vector<8x512xf32>
    %cst_7 = arith.constant dense<0.000000e+00> : vector<512xf32>
    %10 = vector.multi_reduction <add>, %9, %cst_7 [0] : vector<8x512xf32> to vector<512xf32>
    %11 = vector.shape_cast %10 : vector<512xf32> to vector<1x512xf32>
    %cst_8 = arith.constant 8.000000e+00 : f32
    %12 = vector.broadcast %cst_8 : f32 to vector<1x512xf32>
    %13 = arith.divf %11, %12 : vector<1x512xf32>
    %14 = arith.mulf %8, %8 : vector<1x512xf32>
    %15 = arith.subf %13, %14 : vector<1x512xf32>
    %cst_9 = arith.constant 0.000000e+00 : f32
    %16 = vector.broadcast %cst_9 : f32 to vector<1x512xf32>
    %17 = arith.maximumf %15, %16 : vector<1x512xf32>
    %18 = vector.extract_strided_slice %0 {offsets = [0, 0], sizes = [1, 512], strides = [1, 1]} : vector<4x512xf32> to vector<1x512xf32>
    %cst_10 = arith.constant 9.99999974E-6 : f32
    %19 = vector.broadcast %cst_10 : f32 to vector<1x512xf32>
    %20 = arith.addf %17, %19 : vector<1x512xf32>
    %21 = math.rsqrt %20 : vector<1x512xf32>
    %22 = arith.mulf %18, %21 : vector<1x512xf32>
    %23 = vector.extract_strided_slice %0 {offsets = [1, 0], sizes = [1, 512], strides = [1, 1]} : vector<4x512xf32> to vector<1x512xf32>
    %24 = arith.mulf %8, %22 : vector<1x512xf32>
    %25 = arith.subf %23, %24 : vector<1x512xf32>
    %26 = vector.broadcast %22 : vector<1x512xf32> to vector<8x512xf32>
    %27 = arith.mulf %4, %26 : vector<8x512xf32>
    %28 = vector.broadcast %25 : vector<1x512xf32> to vector<8x512xf32>
    %29 = arith.addf %27, %28 : vector<8x512xf32>
    %cst_11 = arith.constant 0.000000e+00 : f32
    %30 = vector.broadcast %cst_11 : f32 to vector<8x512xf32>
    %31 = arith.maximumf %29, %30 : vector<8x512xf32>
    %c0_12 = arith.constant 0 : index
    %c0_13 = arith.constant 0 : index
    %32 = vector.load %arg3[%c0_12, %c0_13] : memref<512x512xi8, #tpu.memory_space<vmem>>, vector<512x512xi8>
    %33 = arith.sitofp %32 : vector<512x512xi8> to vector<512x512xbf16>
    %34 = arith.truncf %31 : vector<8x512xf32> to vector<8x512xbf16>
    %cst_14 = arith.constant dense<0.000000e+00> : vector<8x512xf32>
    %35 = tpu.matmul %34, %33, %cst_14 {dimension_numbers = #tpu.dot_dimension_numbers<[1], [0], [0], [1], [0, 0, 1, 1], [], []>} : vector<8x512xbf16>, vector<512x512xbf16>, vector<8x512xf32> -> vector<8x512xf32>
    %cst_15 = arith.constant dense<0.000000e+00> : vector<512xf32>
    %36 = vector.multi_reduction <add>, %35, %cst_15 [0] : vector<8x512xf32> to vector<512xf32>
    %37 = vector.shape_cast %36 : vector<512xf32> to vector<1x512xf32>
    %cst_16 = arith.constant 8.000000e+00 : f32
    %38 = vector.broadcast %cst_16 : f32 to vector<1x512xf32>
    %39 = arith.divf %37, %38 : vector<1x512xf32>
    %40 = arith.mulf %35, %35 : vector<8x512xf32>
    %cst_17 = arith.constant dense<0.000000e+00> : vector<512xf32>
    %41 = vector.multi_reduction <add>, %40, %cst_17 [0] : vector<8x512xf32> to vector<512xf32>
    %42 = vector.shape_cast %41 : vector<512xf32> to vector<1x512xf32>
    %cst_18 = arith.constant 8.000000e+00 : f32
    %43 = vector.broadcast %cst_18 : f32 to vector<1x512xf32>
    %44 = arith.divf %42, %43 : vector<1x512xf32>
    %45 = arith.mulf %39, %39 : vector<1x512xf32>
    %46 = arith.subf %44, %45 : vector<1x512xf32>
    %cst_19 = arith.constant 0.000000e+00 : f32
    %47 = vector.broadcast %cst_19 : f32 to vector<1x512xf32>
    %48 = arith.maximumf %46, %47 : vector<1x512xf32>
    %49 = vector.extract_strided_slice %0 {offsets = [2, 0], sizes = [1, 512], strides = [1, 1]} : vector<4x512xf32> to vector<1x512xf32>
    %cst_20 = arith.constant 9.99999974E-6 : f32
    %50 = vector.broadcast %cst_20 : f32 to vector<1x512xf32>
    %51 = arith.addf %48, %50 : vector<1x512xf32>
    %52 = math.rsqrt %51 : vector<1x512xf32>
    %53 = arith.mulf %49, %52 : vector<1x512xf32>
    %54 = vector.extract_strided_slice %0 {offsets = [3, 0], sizes = [1, 512], strides = [1, 1]} : vector<4x512xf32> to vector<1x512xf32>
    %55 = arith.mulf %39, %53 : vector<1x512xf32>
    %56 = arith.subf %54, %55 : vector<1x512xf32>
    %57 = vector.broadcast %53 : vector<1x512xf32> to vector<8x512xf32>
    %58 = arith.mulf %35, %57 : vector<8x512xf32>
    %59 = vector.broadcast %56 : vector<1x512xf32> to vector<8x512xf32>
    %60 = arith.addf %58, %59 : vector<8x512xf32>
    %cst_21 = arith.constant 0.000000e+00 : f32
    %61 = vector.broadcast %cst_21 : f32 to vector<8x512xf32>
    %62 = arith.maximumf %60, %61 : vector<8x512xf32>
    %63 = arith.truncf %62 : vector<8x512xf32> to vector<8x512xbf16>
    %c0_22 = arith.constant 0 : index
    %c0_23 = arith.constant 0 : index
    %64 = vector.load %arg4[%c0_22, %c0_23] : memref<512x36xbf16, #tpu.memory_space<vmem>>, vector<512x36xbf16>
    %cst_24 = arith.constant dense<0.000000e+00> : vector<8x36xf32>
    %65 = tpu.matmul %63, %64, %cst_24 {dimension_numbers = #tpu.dot_dimension_numbers<[1], [0], [0], [1], [0, 0, 1, 1], [], []>} : vector<8x512xbf16>, vector<512x36xbf16>, vector<8x36xf32> -> vector<8x36xf32>
    %c0_25 = arith.constant 0 : index
    %c0_26 = arith.constant 0 : index
    %66 = vector.load %arg5[%c0_25, %c0_26] : memref<1x36xf32, #tpu.memory_space<vmem>>, vector<1x36xf32>
    %67 = vector.broadcast %66 : vector<1x36xf32> to vector<8x36xf32>
    %68 = arith.addf %65, %67 : vector<8x36xf32>
    %69 = tpu.iota {dimensions = array<i32: 1>} : vector<8x36xi32>
    %c18_i32 = arith.constant 18 : i32
    %70 = vector.broadcast %c18_i32 : i32 to vector<8x36xi32>
    %71 = arith.cmpi slt, %69, %70 : vector<8x36xi32>
    %72 = math.exp %68 : vector<8x36xf32>
    %cst_27 = arith.constant 9.99999971E-10 : f32
    %73 = vector.broadcast %cst_27 : f32 to vector<8x36xf32>
    %74 = arith.addf %72, %73 : vector<8x36xf32>
    %75 = math.sqrt %74 : vector<8x36xf32>
    %76 = arith.select %71, %68, %75 : vector<8x36xi1>, vector<8x36xf32>
    %c0_28 = arith.constant 0 : index
    %c0_29 = arith.constant 0 : index
    %77 = vector.load %arg6[%c0_28, %c0_29] : memref<8x36xf32, #tpu.memory_space<vmem>>, vector<8x36xf32>
    tpu.vector_store %arg6[%c0_28, %c0_29], %76 {strides = array<i32>} : memref<8x36xf32, #tpu.memory_space<vmem>>, vector<8x36xf32>,
    return
  }
}

</mosaic_0001>

<llo_original>
// kernel: tpu_custom_call.1
$region0: #{tpu_custom_call.1}
  #allocation0 [shape = 'u32[]', space=smem, size = 0x4, offset = 0x4, fixed_abs, tag = 'smem constant byte address 0x4 - core index']
  #allocation1 [shape = 'u32[72,128]{1,0:T(1,128)}', space=vmem, size = 0x9000, scoped, tag = 'internal scratch']
  %s0 = inlined_call_operand.vmem [shape: f32[8,18], index: 0, kind: input, shape index: {}]
  %s1 = inlined_call_operand.vmem [shape: bf16[18,512], index: 1, kind: input, shape index: {}]
  %s2 = inlined_call_operand.vmem [shape: f32[4,512], index: 2, kind: input, shape index: {}]
  %s3 = inlined_call_operand.hbm [shape: s8[512,512], index: 3, kind: input, shape index: {}]
  %s4 = inlined_call_operand.vmem [shape: bf16[512,36], index: 4, kind: input, shape index: {}]
  %s5 = inlined_call_operand.vmem [shape: f32[1,36], index: 5, kind: input, shape index: {}]
  %s6 = inlined_call_operand.hbm [shape: f32[8,36], index: 6, kind: output, shape index: {}]
  %s7 = sld [smem:[#allocation0]]
  $region38: #{tpu_custom_call.1} parent=0
    _
  %s9 = ssub.s32 1, %s7
  %s10 = scalar_select 0, %s9, %s7
  $region1: #{tpu_custom_call.1} parent=0
    #allocation2 [shape = 'u8[262144]{0}', space=vmem, size = 0x40000, scoped, tag = 'input window, operand 3, single buffered']
    #allocation3 [shape = 's32[1]{0}', space=sflag, size = 0x4, scoped, tag = 'scoped memory for tpu_custom_call.1']
    #allocation4 [shape = 's32[1]{0}', space=sflag, size = 0x4, scoped, tag = 'scoped memory for tpu_custom_call.1']
    #allocation5 [shape = 'u8[4096]{0}', space=vmem, size = 0x1000, scoped, tag = 'output window, operand 0, single buffered']
    %11 = vsyncpa [#allocation3], 0
    %12 = vsyncpa [#allocation4], 0
    // Predicated region
    $region2: #{tpu_custom_call.1} parent=1 // pred_check
      _
    $region3: #{tpu_custom_call.1} parent=1 // pred_check_branch
      %14 = sbr.rel (0) target = $region5
    $region4: #{tpu_custom_call.1} parent=1 // pred_region
      _
    $region5: #{tpu_custom_call.1} parent=1 // pred_fallthru
      _
    // Predicated region
    $region6: #{tpu_custom_call.1} parent=1 // pred_check
      _
    $region7: #{tpu_custom_call.1} parent=1 // pred_check_branch
      %16 = sbr.rel (0) target = $region9
    $region8: #{tpu_custom_call.1} parent=1 // pred_region
      _
    $region9: #{tpu_custom_call.1} parent=1 // pred_fallthru
      _
    // Predicated region
    $region10: #{tpu_custom_call.1} parent=1 // pred_check
      _
    $region11: #{tpu_custom_call.1} parent=1 // pred_check_branch
      %18 = sbr.rel (0) target = $region13
    $region12: #{tpu_custom_call.1} parent=1 // pred_region
      _
    $region13: #{tpu_custom_call.1} parent=1 // pred_fallthru
      _
    // Predicated region
    $region14: #{tpu_custom_call.1} parent=1 // pred_check
      _
    $region15: #{tpu_custom_call.1} parent=1 // pred_check_branch
      %20 = sbr.rel (0) target = $region17
    $region16: #{tpu_custom_call.1} parent=1 // pred_region
      %22 = vsyncadd [#allocation3], 0
      %s23 = sshll.u32 %s3, 4
      %s24 = int_to_ptr.hbm [resolvable:$true] %s23
      %s25 = sshll.u32 [#allocation2], 4
      %s26 = int_to_ptr.vmem [resolvable:$true] %s25
      %31 = dma.hbm_to_vmem [thread:$0]  %s24, 8192, %s26, [#allocation3], 512, 512, 32
    $region17: #{tpu_custom_call.1} parent=1 // pred_fallthru
      _
    // Predicated region
    $region18: #{tpu_custom_call.1} parent=1 // pred_check
      _
    $region19: #{tpu_custom_call.1} parent=1 // pred_check_branch
      %33 = sbr.rel (0) target = $region21
    $region20: #{tpu_custom_call.1} parent=1 // pred_region
      _
    $region21: #{tpu_custom_call.1} parent=1 // pred_fallthru
      _
    // Predicated region
    $region22: #{tpu_custom_call.1} parent=1 // pred_check
      _
    $region23: #{tpu_custom_call.1} parent=1 // pred_check_branch
      %35 = sbr.rel (0) target = $region25
    $region24: #{tpu_custom_call.1} parent=1 // pred_region
      _
    $region25: #{tpu_custom_call.1} parent=1 // pred_fallthru
      _
    // Predicated region
    $region26: #{tpu_custom_call.1} parent=1 // pred_check
      _
    $region27: #{tpu_custom_call.1} parent=1 // pred_check_branch
      %37 = sbr.rel (0) target = $region29
    $region28: #{tpu_custom_call.1} parent=1 // pred_region
      %39 = dma.done [#allocation3], 8192
    $region29: #{tpu_custom_call.1} parent=1 // pred_fallthru
      _
    %v41 = vld [vmem:[%s2] sm:$0xff]
    %v42 = vld [vmem:[%s2 + $0x8] sm:$0xff]
    %v43 = vld [vmem:[%s0] sm:$0xff]
    %v44 = vpack.c.bf16 %v43, %v43
    %v45 = vld [vmem:[%s1] sm:$0xff]
    %v46 = vld [vmem:[%s1 + $0x8] sm:$0xff]
    %v47 = vld [vmem:[%s1 + $0x10] sm:$0xff]
    %v48 = vld [vmem:[%s1 + $0x18] sm:$0xff]
    %v49 = vld [vmem:[%s1 + $0x20] sm:$0x11]
    %v50 = vld [vmem:[%s1 + $0x28] sm:$0x11]
    %v57 = vunpack.c.l.b16 %v45
    %v58 = vunpack.c.h.b16 %v45
    %v59 = vunpack.c.l.b16 %v46
    %v60 = vunpack.c.h.b16 %v46
    %v61 = vunpack.c.l.b16 %v47
    %v62 = vunpack.c.h.b16 %v47
    %v63 = vunpack.c.l.b16 %v48
    %v64 = vunpack.c.h.b16 %v48
    %v65 = vunpack.c.l.b16 %v49
    %v66 = vunpack.c.h.b16 %v49
    %v67 = vunpack.c.l.b16 %v50
    %v68 = vunpack.c.h.b16 %v50
    %v69 = vpack.c.b16 %v61, %v57
    %v70 = vpack.c.b16 %v62, %v58
    %v71 = vpack.c.b16 %v63, %v59
    %v72 = vpack.c.b16 %v64, %v60
    %v73 = vpack.c.b16 %v65, %v65
    %v74 = vpack.c.b16 %v66, %v66
    %v75 = vpack.c.b16 %v67, %v67
    %v76 = vpack.c.b16 %v68, %v68
    %vm81 = vcmask 146432
    %v83 = vsel %vm81, %v44, 0
    %vm85 = vcmask 1040384
    %v87 = vsel %vm85, %v73, 0
    %v90 = vsel %vm85, %v74, 0
    %v93 = vsel %vm85, %v75, 0
    %v96 = vsel %vm85, %v76, 0
    %98 = vmatpush.bf16.msra.mxu0 0
    %99 = vmatpush.bf16.msra.mxu0 0
    %100 = vmatpush.bf16.msra.mxu0 0
    %101 = vmatpush.bf16.msra.mxu0 0
    %102 = vmatpush.bf16.msra.mxu0 0
    %103 = vmatpush.bf16.msra.mxu0 0
    %104 = vmatpush.bf16.msra.mxu0 %v87
    %105 = vmatpush.bf16.msra.mxu0 %v69
    %106 = vmatmul.bf16.gmra.mxu0 %v83
    %v107 = vpop.f32.mrf.mxu0
    %v108 = vadd.f32 0.0, %v107
    %v109 = vpop.f32.mrf.mxu0
    %110 = vdwg.mxu0
    %111 = vmatpush.bf16.msra.mxu0 0
    %112 = vmatpush.bf16.msra.mxu0 0
    %113 = vmatpush.bf16.msra.mxu0 0
    %114 = vmatpush.bf16.msra.mxu0 0
    %115 = vmatpush.bf16.msra.mxu0 0
    %116 = vmatpush.bf16.msra.mxu0 0
    %117 = vmatpush.bf16.msra.mxu0 %v90
    %118 = vmatpush.bf16.msra.mxu0 %v70
    %119 = vmatmul.bf16.gmra.mxu0 %v83
    %v120 = vpop.f32.mrf.mxu0
    %v121 = vadd.f32 0.0, %v120
    %v122 = vpop.f32.mrf.mxu0
    %123 = vdwg.mxu0
    %124 = vmatpush.bf16.msra.mxu0 0
    %125 = vmatpush.bf16.msra.mxu0 0
    %126 = vmatpush.bf16.msra.mxu0 0
    %127 = vmatpush.bf16.msra.mxu0 0
    %128 = vmatpush.bf16.msra.mxu0 0
    %129 = vmatpush.bf16.msra.mxu0 0
    %130 = vmatpush.bf16.msra.mxu0 %v93
    %131 = vmatpush.bf16.msra.mxu0 %v71
    %132 = vmatmul.bf16.gmra.mxu0 %v83
    %v133 = vpop.f32.mrf.mxu0
    %v134 = vadd.f32 0.0, %v133
    %v135 = vpop.f32.mrf.mxu0
    %136 = vdwg.mxu0
    %137 = vmatpush.bf16.msra.mxu0 0
    %138 = vmatpush.bf16.msra.mxu0 0
    %139 = vmatpush.bf16.msra.mxu0 0
    %140 = vmatpush.bf16.msra.mxu0 0
    %141 = vmatpush.bf16.msra.mxu0 0
    %142 = vmatpush.bf16.msra.mxu0 0
    %143 = vmatpush.bf16.msra.mxu0 %v96
    %144 = vmatpush.bf16.msra.mxu0 %v72
    %145 = vmatmul.bf16.gmra.mxu0 %v83
    %v146 = vpop.f32.mrf.mxu0
    %v147 = vadd.f32 0.0, %v146
    %v148 = vpop.f32.mrf.mxu0
    %149 = vdwg.mxu0
    %v150 = vrot.slane %v108, 4
    %v151 = vadd.f32 %v108, %v150
    %v152 = vrot.slane %v151, 2
    %v153 = vadd.f32 %v151, %v152
    %v154 = vrot.slane %v153, 1
    %v155 = vadd.f32 %v153, %v154
    %v156 = vrot.slane %v121, 4
    %v157 = vadd.f32 %v121, %v156
    %v158 = vrot.slane %v157, 2
    %v159 = vadd.f32 %v157, %v158
    %v160 = vrot.slane %v159, 1
    %v161 = vadd.f32 %v159, %v160
    %v162 = vrot.slane %v134, 4
    %v163 = vadd.f32 %v134, %v162
    %v164 = vrot.slane %v163, 2
    %v165 = vadd.f32 %v163, %v164
    %v166 = vrot.slane %v165, 1
    %v167 = vadd.f32 %v165, %v166
    %v168 = vrot.slane %v147, 4
    %v169 = vadd.f32 %v147, %v168
    %v170 = vrot.slane %v169, 2
    %v171 = vadd.f32 %v169, %v170
    %v172 = vrot.slane %v171, 1
    %v173 = vadd.f32 %v171, %v172
    %v174 = vrcp.pop 8.0
    %v175 = vmul.f32 8.0, %v174
    %v176 = vsub.f32 1.0, %v175
    %v177 = vmul.f32 %v174, %v176
    %v178 = vadd.f32 %v174, %v177
    %vm179 = vweird.f32 %v174
    %v180 = vsel %vm179, %v174, %v178
    %v181 = vmul.f32 %v155, %v180
    %v182 = vmul.f32 %v161, %v180
    %v183 = vmul.f32 %v167, %v180
    %v184 = vmul.f32 %v173, %v180
    %v185 = vmul.f32 %v108, %v108
    %v186 = vmul.f32 %v121, %v121
    %v187 = vmul.f32 %v134, %v134
    %v188 = vmul.f32 %v147, %v147
    %v189 = vrot.slane %v185, 4
    %v190 = vadd.f32 %v185, %v189
    %v191 = vrot.slane %v190, 2
    %v192 = vadd.f32 %v190, %v191
    %v193 = vrot.slane %v192, 1
    %v194 = vadd.f32 %v192, %v193
    %v195 = vrot.slane %v186, 4
    %v196 = vadd.f32 %v186, %v195
    %v197 = vrot.slane %v196, 2
    %v198 = vadd.f32 %v196, %v197
    %v199 = vrot.slane %v198, 1
    %v200 = vadd.f32 %v198, %v199
    %v201 = vrot.slane %v187, 4
    %v202 = vadd.f32 %v187, %v201
    %v203 = vrot.slane %v202, 2
    %v204 = vadd.f32 %v202, %v203
    %v205 = vrot.slane %v204, 1
    %v206 = vadd.f32 %v204, %v205
    %v207 = vrot.slane %v188, 4
    %v208 = vadd.f32 %v188, %v207
    %v209 = vrot.slane %v208, 2
    %v210 = vadd.f32 %v208, %v209
    %v211 = vrot.slane %v210, 1
    %v212 = vadd.f32 %v210, %v211
    %v213 = vmul.f32 %v194, %v180
    %v214 = vmul.f32 %v200, %v180
    %v215 = vmul.f32 %v206, %v180
    %v216 = vmul.f32 %v212, %v180
    %v217 = vmul.f32 %v181, %v181
    %v218 = vmul.f32 %v182, %v182
    %v219 = vmul.f32 %v183, %v183
    %v220 = vmul.f32 %v184, %v184
    %v221 = vsub.f32 %v213, %v217
    %v222 = vsub.f32 %v214, %v218
    %v223 = vsub.f32 %v215, %v219
    %v224 = vsub.f32 %v216, %v220
    %v225 = vmax.f32 %v221, 0.0
    %v226 = vmax.f32 %v222, 0.0
    %v227 = vmax.f32 %v223, 0.0
    %v228 = vmax.f32 %v224, 0.0
    %v229 = vadd.f32 %v225, 1e-05
    %v230 = vadd.f32 %v226, 1e-05
    %v231 = vadd.f32 %v227, 1e-05
    %v232 = vadd.f32 %v228, 1e-05
    %v233 = vrsqrt.pop %v229
    %v234 = vmul.f32 %v233, %v229
    %v235 = vmul.f32 %v234, %v233
    %v236 = vmul.f32 0.5, %v235
    %v237 = vsub.f32 1.5, %v236
    %v238 = vmul.f32 %v233, %v237
    %vm239 = vweird.f32 %v229
    %vm240 = vweird.f32 %v233
    %vm241 = vmor %vm239, %vm240
    %v242 = vsel %vm241, %v233, %v238
    %v243 = vrsqrt.pop %v230
    %v244 = vmul.f32 %v243, %v230
    %v245 = vmul.f32 %v244, %v243
    %v246 = vmul.f32 0.5, %v245
    %v247 = vsub.f32 1.5, %v246
    %v248 = vmul.f32 %v243, %v247
    %vm249 = vweird.f32 %v230
    %vm250 = vweird.f32 %v243
    %vm251 = vmor %vm249, %vm250
    %v252 = vsel %vm251, %v243, %v248
    %v253 = vrsqrt.pop %v231
    %v254 = vmul.f32 %v253, %v231
    %v255 = vmul.f32 %v254, %v253
    %v256 = vmul.f32 0.5, %v255
    %v257 = vsub.f32 1.5, %v256
    %v258 = vmul.f32 %v253, %v257
    %vm259 = vweird.f32 %v231
    %vm260 = vweird.f32 %v253
    %vm261 = vmor %vm259, %vm260
    %v262 = vsel %vm261, %v253, %v258
    %v263 = vrsqrt.pop %v232
    %v264 = vmul.f32 %v263, %v232
    %v265 = vmul.f32 %v264, %v263
    %v266 = vmul.f32 0.5, %v265
    %v267 = vsub.f32 1.5, %v266
    %v268 = vmul.f32 %v263, %v267
    %vm269 = vweird.f32 %v232
    %vm270 = vweird.f32 %v263
    %vm271 = vmor %vm269, %vm270
    %v272 = vsel %vm271, %v263, %v268
    %v277 = vrot.slane %v252, 4
    %v278 = vrot.slane %v272, 4
    %vm279 = vcmask 1043456
    %v280 = vsel %vm279, %v242, %v277
    %v281 = vsel %vm279, %v262, %v278
    %v284 = vmul.f32 %v41, %v280
    %v285 = vmul.f32 %v42, %v281
    %v288 = vperm.slane %v284, 0
    %v289 = vperm.slane %v284, 4
    %v290 = vperm.slane %v285, 0
    %v291 = vperm.slane %v285, 4
    %v296 = vmul.f32 %v181, %v288
    %v297 = vmul.f32 %v182, %v289
    %v298 = vmul.f32 %v183, %v290
    %v299 = vmul.f32 %v184, %v291
    %v304 = vrot.slane %v297, 4
    %v305 = vrot.slane %v299, 4
    %v306 = vsel %vm279, %v296, %v304
    %v307 = vsel %vm279, %v298, %v305
    %v308 = vrot.slane %v306, 7
    %v309 = vrot.slane %v307, 7
    %v312 = vsub.f32 %v41, %v308
    %v313 = vsub.f32 %v42, %v309
    %v314 = vperm.slane %v288, 0
    %v315 = vperm.slane %v289, 0
    %v316 = vperm.slane %v290, 0
    %v317 = vperm.slane %v291, 0
    %v318 = vmul.f32 %v108, %v314
    %v319 = vmul.f32 %v121, %v315
    %v320 = vmul.f32 %v134, %v316
    %v321 = vmul.f32 %v147, %v317
    %v324 = vperm.slane %v312, 1
    %v325 = vperm.slane %v312, 5
    %v326 = vperm.slane %v313, 1
    %v327 = vperm.slane %v313, 5
    %v332 = vperm.slane %v324, 1
    %v333 = vperm.slane %v325, 1
    %v334 = vperm.slane %v326, 1
    %v335 = vperm.slane %v327, 1
    %v336 = vadd.f32 %v318, %v332
    %v337 = vadd.f32 %v319, %v333
    %v338 = vadd.f32 %v320, %v334
    %v339 = vadd.f32 %v321, %v335
    %v340 = vmax.f32 %v336, 0.0
    %v341 = vmax.f32 %v337, 0.0
    %v342 = vmax.f32 %v338, 0.0
    %v343 = vmax.f32 %v339, 0.0
    %v344 = vld [vmem:[#allocation2] sm:$0xff]
    %v345 = vld [vmem:[#allocation2 + $0x8] sm:$0xff]
    %v346 = vld [vmem:[#allocation2 + $0x10] sm:$0xff]
    %v347 = vld [vmem:[#allocation2 + $0x18] sm:$0xff]
    %v348 = vld [vmem:[#allocation2 + $0x20] sm:$0xff]
    %v349 = vld [vmem:[#allocation2 + $0x28] sm:$0xff]
    %v350 = vld [vmem:[#allocation2 + $0x30] sm:$0xff]
    %v351 = vld [vmem:[#allocation2 + $0x38] sm:$0xff]
    %v352 = vld [vmem:[#allocation2 + $0x40] sm:$0xff]
    %v353 = vld [vmem:[#allocation2 + $0x48] sm:$0xff]
    %v354 = vld [vmem:[#allocation2 + $0x50] sm:$0xff]
    %v355 = vld [vmem:[#allocation2 + $0x58] sm:$0xff]
    %v356 = vld [vmem:[#allocation2 + $0x60] sm:$0xff]
    %v357 = vld [vmem:[#allocation2 + $0x68] sm:$0xff]
    %v358 = vld [vmem:[#allocation2 + $0x70] sm:$0xff]
    %v359 = vld [vmem:[#allocation2 + $0x78] sm:$0xff]
    %v360 = vld [vmem:[#allocation2 + $0x80] sm:$0xff]
    %v361 = vld [vmem:[#allocation2 + $0x88] sm:$0xff]
    %v362 = vld [vmem:[#allocation2 + $0x90] sm:$0xff]
    %v363 = vld [vmem:[#allocation2 + $0x98] sm:$0xff]
    %v364 = vld [vmem:[#allocation2 + $0xa0] sm:$0xff]
    %v365 = vld [vmem:[#allocation2 + $0xa8] sm:$0xff]
    %v366 = vld [vmem:[#allocation2 + $0xb0] sm:$0xff]
    %v367 = vld [vmem:[#allocation2 + $0xb8] sm:$0xff]
    %v368 = vld [vmem:[#allocation2 + $0xc0] sm:$0xff]
    %v369 = vld [vmem:[#allocation2 + $0xc8] sm:$0xff]
    %v370 = vld [vmem:[#allocation2 + $0xd0] sm:$0xff]
    %v371 = vld [vmem:[#allocation2 + $0xd8] sm:$0xff]
    %v372 = vld [vmem:[#allocation2 + $0xe0] sm:$0xff]
    %v373 = vld [vmem:[#allocation2 + $0xe8] sm:$0xff]
    %v374 = vld [vmem:[#allocation2 + $0xf0] sm:$0xff]
    %v375 = vld [vmem:[#allocation2 + $0xf8] sm:$0xff]
    %v376 = vld [vmem:[#allocation2 + $0x100] sm:$0xff]
    %v377 = vld [vmem:[#allocation2 + $0x108] sm:$0xff]
    %v378 = vld [vmem:[#allocation2 + $0x110] sm:$0xff]
    %v379 = vld [vmem:[#allocation2 + $0x118] sm:$0xff]
    %v380 = vld [vmem:[#allocation2 + $0x120] sm:$0xff]
    %v381 = vld [vmem:[#allocation2 + $0x128] sm:$0xff]
    %v382 = vld [vmem:[#allocation2 + $0x130] sm:$0xff]
    %v383 = vld [vmem:[#allocation2 + $0x138] sm:$0xff]
    %v384 = vld [vmem:[#allocation2 + $0x140] sm:$0xff]
    %v385 = vld [vmem:[#allocation2 + $0x148] sm:$0xff]
    %v386 = vld [vmem:[#allocation2 + $0x150] sm:$0xff]
    %v387 = vld [vmem:[#allocation2 + $0x158] sm:$0xff]
    %v388 = vld [vmem:[#allocation2 + $0x160] sm:$0xff]
    %v389 = vld [vmem:[#allocation2 + $0x168] sm:$0xff]
    %v390 = vld [vmem:[#allocation2 + $0x170] sm:$0xff]
    %v391 = vld [vmem:[#allocation2 + $0x178] sm:$0xff]
    %v392 = vld [vmem:[#allocation2 + $0x180] sm:$0xff]
    %v393 = vld [vmem:[#allocation2 + $0x188] sm:$0xff]
    %v394 = vld [vmem:[#allocation2 + $0x190] sm:$0xff]
    %v395 = vld [vmem:[#allocation2 + $0x198] sm:$0xff]
    %v396 = vld [vmem:[#allocation2 + $0x1a0] sm:$0xff]
    %v397 = vld [vmem:[#allocation2 + $0x1a8] sm:$0xff]
    %v398 = vld [vmem:[#allocation2 + $0x1b0] sm:$0xff]
    %v399 = vld [vmem:[#allocation2 + $0x1b8] sm:$0xff]
    %v400 = vld [vmem:[#allocation2 + $0x1c0] sm:$0xff]
    %v401 = vld [vmem:[#allocation2 + $0x1c8] sm:$0xff]
    %v402 = vld [vmem:[#allocation2 + $0x1d0] sm:$0xff]
    %v403 = vld [vmem:[#allocation2 + $0x1d8] sm:$0xff]
    %v404 = vld [vmem:[#allocation2 + $0x1e0] sm:$0xff]
    %v405 = vld [vmem:[#allocation2 + $0x1e8] sm:$0xff]
    %v406 = vld [vmem:[#allocation2 + $0x1f0] sm:$0xff]
    %v407 = vld [vmem:[#allocation2 + $0x1f8] sm:$0xff]
    %v408 = vunpack.c.0.s8 %v344
    %v409 = vunpack.c.0.s8 %v345
    %v410 = vunpack.c.0.s8 %v346
    %v411 = vunpack.c.0.s8 %v347
    %v412 = vunpack.c.1.s8 %v344
    %v413 = vunpack.c.1.s8 %v345
    %v414 = vunpack.c.1.s8 %v346
    %v415 = vunpack.c.1.s8 %v347
    %v416 = vunpack.c.2.s8 %v344
    %v417 = vunpack.c.2.s8 %v345
    %v418 = vunpack.c.2.s8 %v346
    %v419 = vunpack.c.2.s8 %v347
    %v420 = vunpack.c.3.s8 %v344
    %v421 = vunpack.c.3.s8 %v345
    %v422 = vunpack.c.3.s8 %v346
    %v423 = vunpack.c.3.s8 %v347
    %v424 = vunpack.c.0.s8 %v348
    %v425 = vunpack.c.0.s8 %v349
    %v426 = vunpack.c.0.s8 %v350
    %v427 = vunpack.c.0.s8 %v351
    %v428 = vunpack.c.1.s8 %v348
    %v429 = vunpack.c.1.s8 %v349
    %v430 = vunpack.c.1.s8 %v350
    %v431 = vunpack.c.1.s8 %v351
    %v432 = vunpack.c.2.s8 %v348
    %v433 = vunpack.c.2.s8 %v349
    %v434 = vunpack.c.2.s8 %v350
    %v435 = vunpack.c.2.s8 %v351
    %v436 = vunpack.c.3.s8 %v348
    %v437 = vunpack.c.3.s8 %v349
    %v438 = vunpack.c.3.s8 %v350
    %v439 = vunpack.c.3.s8 %v351
    %v440 = vunpack.c.0.s8 %v352
    %v441 = vunpack.c.0.s8 %v353
    %v442 = vunpack.c.0.s8 %v354
    %v443 = vunpack.c.0.s8 %v355
    %v444 = vunpack.c.1.s8 %v352
    %v445 = vunpack.c.1.s8 %v353
    %v446 = vunpack.c.1.s8 %v354
    %v447 = vunpack.c.1.s8 %v355
    %v448 = vunpack.c.2.s8 %v352
    %v449 = vunpack.c.2.s8 %v353
    %v450 = vunpack.c.2.s8 %v354
    %v451 = vunpack.c.2.s8 %v355
    %v452 = vunpack.c.3.s8 %v352
    %v453 = vunpack.c.3.s8 %v353
    %v454 = vunpack.c.3.s8 %v354
    %v455 = vunpack.c.3.s8 %v355
    %v456 = vunpack.c.0.s8 %v356
    %v457 = vunpack.c.0.s8 %v357
    %v458 = vunpack.c.0.s8 %v358
    %v459 = vunpack.c.0.s8 %v359
    %v460 = vunpack.c.1.s8 %v356
    %v461 = vunpack.c.1.s8 %v357
    %v462 = vunpack.c.1.s8 %v358
    %v463 = vunpack.c.1.s8 %v359
    %v464 = vunpack.c.2.s8 %v356
    %v465 = vunpack.c.2.s8 %v357
    %v466 = vunpack.c.2.s8 %v358
    %v467 = vunpack.c.2.s8 %v359
    %v468 = vunpack.c.3.s8 %v356
    %v469 = vunpack.c.3.s8 %v357
    %v470 = vunpack.c.3.s8 %v358
    %v471 = vunpack.c.3.s8 %v359
    %v472 = vunpack.c.0.s8 %v360
    %v473 = vunpack.c.0.s8 %v361
    %v474 = vunpack.c.0.s8 %v362
    %v475 = vunpack.c.0.s8 %v363
    %v476 = vunpack.c.1.s8 %v360
    %v477 = vunpack.c.1.s8 %v361
    %v478 = vunpack.c.1.s8 %v362
    %v479 = vunpack.c.1.s8 %v363
    %v480 = vunpack.c.2.s8 %v360
    %v481 = vunpack.c.2.s8 %v361
    %v482 = vunpack.c.2.s8 %v362
    %v483 = vunpack.c.2.s8 %v363
    %v484 = vunpack.c.3.s8 %v360
    %v485 = vunpack.c.3.s8 %v361
    %v486 = vunpack.c.3.s8 %v362
    %v487 = vunpack.c.3.s8 %v363
    %v488 = vunpack.c.0.s8 %v364
    %v489 = vunpack.c.0.s8 %v365
    %v490 = vunpack.c.0.s8 %v366
    %v491 = vunpack.c.0.s8 %v367
    %v492 = vunpack.c.1.s8 %v364
    %v493 = vunpack.c.1.s8 %v365
    %v494 = vunpack.c.1.s8 %v366
    %v495 = vunpack.c.1.s8 %v367
    %v496 = vunpack.c.2.s8 %v364
    %v497 = vunpack.c.2.s8 %v365
    %v498 = vunpack.c.2.s8 %v366
    %v499 = vunpack.c.2.s8 %v367
    %v500 = vunpack.c.3.s8 %v364
    %v501 = vunpack.c.3.s8 %v365
    %v502 = vunpack.c.3.s8 %v366
    %v503 = vunpack.c.3.s8 %v367
    %v504 = vunpack.c.0.s8 %v368
    %v505 = vunpack.c.0.s8 %v369
    %v506 = vunpack.c.0.s8 %v370
    %v507 = vunpack.c.0.s8 %v371
    %v508 = vunpack.c.1.s8 %v368
    %v509 = vunpack.c.1.s8 %v369
    %v510 = vunpack.c.1.s8 %v370
    %v511 = vunpack.c.1.s8 %v371
    %v512 = vunpack.c.2.s8 %v368
    %v513 = vunpack.c.2.s8 %v369
    %v514 = vunpack.c.2.s8 %v370
    %v515 = vunpack.c.2.s8 %v371
    %v516 = vunpack.c.3.s8 %v368
    %v517 = vunpack.c.3.s8 %v369
    %v518 = vunpack.c.3.s8 %v370
    %v519 = vunpack.c.3.s8 %v371
    %v520 = vunpack.c.0.s8 %v372
    %v521 = vunpack.c.0.s8 %v373
    %v522 = vunpack.c.0.s8 %v374
    %v523 = vunpack.c.0.s8 %v375
    %v524 = vunpack.c.1.s8 %v372
    %v525 = vunpack.c.1.s8 %v373
    %v526 = vunpack.c.1.s8 %v374
    %v527 = vunpack.c.1.s8 %v375
    %v528 = vunpack.c.2.s8 %v372
    %v529 = vunpack.c.2.s8 %v373
    %v530 = vunpack.c.2.s8 %v374
    %v531 = vunpack.c.2.s8 %v375
    %v532 = vunpack.c.3.s8 %v372
    %v533 = vunpack.c.3.s8 %v373
    %v534 = vunpack.c.3.s8 %v374
    %v535 = vunpack.c.3.s8 %v375
    %v536 = vunpack.c.0.s8 %v376
    %v537 = vunpack.c.0.s8 %v377
    %v538 = vunpack.c.0.s8 %v378
    %v539 = vunpack.c.0.s8 %v379
    %v540 = vunpack.c.1.s8 %v376
    %v541 = vunpack.c.1.s8 %v377
    %v542 = vunpack.c.1.s8 %v378
    %v543 = vunpack.c.1.s8 %v379
    %v544 = vunpack.c.2.s8 %v376
    %v545 = vunpack.c.2.s8 %v377
    %v546 = vunpack.c.2.s8 %v378
    %v547 = vunpack.c.2.s8 %v379
    %v548 = vunpack.c.3.s8 %v376
    %v549 = vunpack.c.3.s8 %v377
    %v550 = vunpack.c.3.s8 %v378
    %v551 = vunpack.c.3.s8 %v379
    %v552 = vunpack.c.0.s8 %v380
    %v553 = vunpack.c.0.s8 %v381
    %v554 = vunpack.c.0.s8 %v382
    %v555 = vunpack.c.0.s8 %v383
    %v556 = vunpack.c.1.s8 %v380
    %v557 = vunpack.c.1.s8 %v381
    %v558 = vunpack.c.1.s8 %v382
    %v559 = vunpack.c.1.s8 %v383
    %v560 = vunpack.c.2.s8 %v380
    %v561 = vunpack.c.2.s8 %v381
    %v562 = vunpack.c.2.s8 %v382
    %v563 = vunpack.c.2.s8 %v383
    %v564 = vunpack.c.3.s8 %v380
    %v565 = vunpack.c.3.s8 %v381
    %v566 = vunpack.c.3.s8 %v382
    %v567 = vunpack.c.3.s8 %v383
    %v568 = vunpack.c.0.s8 %v384
    %v569 = vunpack.c.0.s8 %v385
    %v570 = vunpack.c.0.s8 %v386
    %v571 = vunpack.c.0.s8 %v387
    %v572 = vunpack.c.1.s8 %v384
    %v573 = vunpack.c.1.s8 %v385
    %v574 = vunpack.c.1.s8 %v386
    %v575 = vunpack.c.1.s8 %v387
    %v576 = vunpack.c.2.s8 %v384
    %v577 = vunpack.c.2.s8 %v385
    %v578 = vunpack.c.2.s8 %v386
    %v579 = vunpack.c.2.s8 %v387
    %v580 = vunpack.c.3.s8 %v384
    %v581 = vunpack.c.3.s8 %v385
    %v582 = vunpack.c.3.s8 %v386
    %v583 = vunpack.c.3.s8 %v387
    %v584 = vunpack.c.0.s8 %v388
    %v585 = vunpack.c.0.s8 %v389
    %v586 = vunpack.c.0.s8 %v390
    %v587 = vunpack.c.0.s8 %v391
    %v588 = vunpack.c.1.s8 %v388
    %v589 = vunpack.c.1.s8 %v389
    %v590 = vunpack.c.1.s8 %v390
    %v591 = vunpack.c.1.s8 %v391
    %v592 = vunpack.c.2.s8 %v388
    %v593 = vunpack.c.2.s8 %v389
    %v594 = vunpack.c.2.s8 %v390
    %v595 = vunpack.c.2.s8 %v391
    %v596 = vunpack.c.3.s8 %v388
    %v597 = vunpack.c.3.s8 %v389
    %v598 = vunpack.c.3.s8 %v390
    %v599 = vunpack.c.3.s8 %v391
    %v600 = vunpack.c.0.s8 %v392
    %v601 = vunpack.c.0.s8 %v393
    %v602 = vunpack.c.0.s8 %v394
    %v603 = vunpack.c.0.s8 %v395
    %v604 = vunpack.c.1.s8 %v392
    %v605 = vunpack.c.1.s8 %v393
    %v606 = vunpack.c.1.s8 %v394
    %v607 = vunpack.c.1.s8 %v395
    %v608 = vunpack.c.2.s8 %v392
    %v609 = vunpack.c.2.s8 %v393
    %v610 = vunpack.c.2.s8 %v394
    %v611 = vunpack.c.2.s8 %v395
    %v612 = vunpack.c.3.s8 %v392
    %v613 = vunpack.c.3.s8 %v393
    %v614 = vunpack.c.3.s8 %v394
    %v615 = vunpack.c.3.s8 %v395
    %v616 = vunpack.c.0.s8 %v396
    %v617 = vunpack.c.0.s8 %v397
    %v618 = vunpack.c.0.s8 %v398
    %v619 = vunpack.c.0.s8 %v399
    %v620 = vunpack.c.1.s8 %v396
    %v621 = vunpack.c.1.s8 %v397
    %v622 = vunpack.c.1.s8 %v398
    %v623 = vunpack.c.1.s8 %v399
    %v624 = vunpack.c.2.s8 %v396
    %v625 = vunpack.c.2.s8 %v397
    %v626 = vunpack.c.2.s8 %v398
    %v627 = vunpack.c.2.s8 %v399
    %v628 = vunpack.c.3.s8 %v396
    %v629 = vunpack.c.3.s8 %v397
    %v630 = vunpack.c.3.s8 %v398
    %v631 = vunpack.c.3.s8 %v399
    %v632 = vunpack.c.0.s8 %v400
    %v633 = vunpack.c.0.s8 %v401
    %v634 = vunpack.c.0.s8 %v402
    %v635 = vunpack.c.0.s8 %v403
    %v636 = vunpack.c.1.s8 %v400
    %v637 = vunpack.c.1.s8 %v401
    %v638 = vunpack.c.1.s8 %v402
    %v639 = vunpack.c.1.s8 %v403
    %v640 = vunpack.c.2.s8 %v400
    %v641 = vunpack.c.2.s8 %v401
    %v642 = vunpack.c.2.s8 %v402
    %v643 = vunpack.c.2.s8 %v403
    %v644 = vunpack.c.3.s8 %v400
    %v645 = vunpack.c.3.s8 %v401
    %v646 = vunpack.c.3.s8 %v402
    %v647 = vunpack.c.3.s8 %v403
    %v648 = vunpack.c.0.s8 %v404
    %v649 = vunpack.c.0.s8 %v405
    %v650 = vunpack.c.0.s8 %v406
    %v651 = vunpack.c.0.s8 %v407
    %v652 = vunpack.c.1.s8 %v404
    %v653 = vunpack.c.1.s8 %v405
    %v654 = vunpack.c.1.s8 %v406
    %v655 = vunpack.c.1.s8 %v407
    %v656 = vunpack.c.2.s8 %v404
    %v657 = vunpack.c.2.s8 %v405
    %v658 = vunpack.c.2.s8 %v406
    %v659 = vunpack.c.2.s8 %v407
    %v660 = vunpack.c.3.s8 %v404
    %v661 = vunpack.c.3.s8 %v405
    %v662 = vunpack.c.3.s8 %v406
    %v663 = vunpack.c.3.s8 %v407
    %v664 = vcvt.s32.f32 %v408
    %v665 = vcvt.s32.f32 %v409
    %v666 = vcvt.s32.f32 %v410
    %v667 = vcvt.s32.f32 %v411
    %v668 = vcvt.s32.f32 %v412
    %v669 = vcvt.s32.f32 %v413
    %v670 = vcvt.s32.f32 %v414
    %v671 = vcvt.s32.f32 %v415
    %v672 = vcvt.s32.f32 %v416
    %v673 = vcvt.s32.f32 %v417
    %v674 = vcvt.s32.f32 %v418
    %v675 = vcvt.s32.f32 %v419
    %v676 = vcvt.s32.f32 %v420
    %v677 = vcvt.s32.f32 %v421
    %v678 = vcvt.s32.f32 %v422
    %v679 = vcvt.s32.f32 %v423
    %v680 = vcvt.s32.f32 %v424
    %v681 = vcvt.s32.f32 %v425
    %v682 = vcvt.s32.f32 %v426
    %v683 = vcvt.s32.f32 %v427
    %v684 = vcvt.s32.f32 %v428
    %v685 = vcvt.s32.f32 %v429
    %v686 = vcvt.s32.f32 %v430
    %v687 = vcvt.s32.f32 %v431
    %v688 = vcvt.s32.f32 %v432
    %v689 = vcvt.s32.f32 %v433
    %v690 = vcvt.s32.f32 %v434
    %v691 = vcvt.s32.f32 %v435
    %v692 = vcvt.s32.f32 %v436
    %v693 = vcvt.s32.f32 %v437
    %v694 = vcvt.s32.f32 %v438
    %v695 = vcvt.s32.f32 %v439
    %v696 = vcvt.s32.f32 %v440
    %v697 = vcvt.s32.f32 %v441
    %v698 = vcvt.s32.f32 %v442
    %v699 = vcvt.s32.f32 %v443
    %v700 = vcvt.s32.f32 %v444
    %v701 = vcvt.s32.f32 %v445
    %v702 = vcvt.s32.f32 %v446
    %v703 = vcvt.s32.f32 %v447
    %v704 = vcvt.s32.f32 %v448
    %v705 = vcvt.s32.f32 %v449
    %v706 = vcvt.s32.f32 %v450
    %v707 = vcvt.s32.f32 %v451
    %v708 = vcvt.s32.f32 %v452
    %v709 = vcvt.s32.f32 %v453
    %v710 = vcvt.s32.f32 %v454
    %v711 = vcvt.s32.f32 %v455
    %v712 = vcvt.s32.f32 %v456
    %v713 = vcvt.s32.f32 %v457
    %v714 = vcvt.s32.f32 %v458
    %v715 = vcvt.s32.f32 %v459
    %v716 = vcvt.s32.f32 %v460
    %v717 = vcvt.s32.f32 %v461
    %v718 = vcvt.s32.f32 %v462
    %v719 = vcvt.s32.f32 %v463
    %v720 = vcvt.s32.f32 %v464
    %v721 = vcvt.s32.f32 %v465
    %v722 = vcvt.s32.f32 %v466
    %v723 = vcvt.s32.f32 %v467
    %v724 = vcvt.s32.f32 %v468
    %v725 = vcvt.s32.f32 %v469
    %v726 = vcvt.s32.f32 %v470
    %v727 = vcvt.s32.f32 %v471
    %v728 = vcvt.s32.f32 %v472
    %v729 = vcvt.s32.f32 %v473
    %v730 = vcvt.s32.f32 %v474
    %v731 = vcvt.s32.f32 %v475
    %v732 = vcvt.s32.f32 %v476
    %v733 = vcvt.s32.f32 %v477
    %v734 = vcvt.s32.f32 %v478
    %v735 = vcvt.s32.f32 %v479
    %v736 = vcvt.s32.f32 %v480
    %v737 = vcvt.s32.f32 %v481
    %v738 = vcvt.s32.f32 %v482
    %v739 = vcvt.s32.f32 %v483
    %v740 = vcvt.s32.f32 %v484
    %v741 = vcvt.s32.f32 %v485
    %v742 = vcvt.s32.f32 %v486
    %v743 = vcvt.s32.f32 %v487
    %v744 = vcvt.s32.f32 %v488
    %v745 = vcvt.s32.f32 %v489
    %v746 = vcvt.s32.f32 %v490
    %v747 = vcvt.s32.f32 %v491
    %v748 = vcvt.s32.f32 %v492
    %v749 = vcvt.s32.f32 %v493
    %v750 = vcvt.s32.f32 %v494
    %v751 = vcvt.s32.f32 %v495
    %v752 = vcvt.s32.f32 %v496
    %v753 = vcvt.s32.f32 %v497
    %v754 = vcvt.s32.f32 %v498
    %v755 = vcvt.s32.f32 %v499
    %v756 = vcvt.s32.f32 %v500
    %v757 = vcvt.s32.f32 %v501
    %v758 = vcvt.s32.f32 %v502
    %v759 = vcvt.s32.f32 %v503
    %v760 = vcvt.s32.f32 %v504
    %v761 = vcvt.s32.f32 %v505
    %v762 = vcvt.s32.f32 %v506
    %v763 = vcvt.s32.f32 %v507
    %v764 = vcvt.s32.f32 %v508
    %v765 = vcvt.s32.f32 %v509
    %v766 = vcvt.s32.f32 %v510
    %v767 = vcvt.s32.f32 %v511
    %v768 = vcvt.s32.f32 %v512
    %v769 = vcvt.s32.f32 %v513
    %v770 = vcvt.s32.f32 %v514
    %v771 = vcvt.s32.f32 %v515
    %v772 = vcvt.s32.f32 %v516
    %v773 = vcvt.s32.f32 %v517
    %v774 = vcvt.s32.f32 %v518
    %v775 = vcvt.s32.f32 %v519
    %v776 = vcvt.s32.f32 %v520
    %v777 = vcvt.s32.f32 %v521
    %v778 = vcvt.s32.f32 %v522
    %v779 = vcvt.s32.f32 %v523
    %v780 = vcvt.s32.f32 %v524
    %v781 = vcvt.s32.f32 %v525
    %v782 = vcvt.s32.f32 %v526
    %v783 = vcvt.s32.f32 %v527
    %v784 = vcvt.s32.f32 %v528
    %v785 = vcvt.s32.f32 %v529
    %v786 = vcvt.s32.f32 %v530
    %v787 = vcvt.s32.f32 %v531
    %v788 = vcvt.s32.f32 %v532
    %v789 = vcvt.s32.f32 %v533
    %v790 = vcvt.s32.f32 %v534
    %v791 = vcvt.s32.f32 %v535
    %v792 = vcvt.s32.f32 %v536
    %v793 = vcvt.s32.f32 %v537
    %v794 = vcvt.s32.f32 %v538
    %v795 = vcvt.s32.f32 %v539
    %v796 = vcvt.s32.f32 %v540
    %v797 = vcvt.s32.f32 %v541
    %v798 = vcvt.s32.f32 %v542
    %v799 = vcvt.s32.f32 %v543
    %v800 = vcvt.s32.f32 %v544
    %v801 = vcvt.s32.f32 %v545
    %v802 = vcvt.s32.f32 %v546
    %v803 = vcvt.s32.f32 %v547
    %v804 = vcvt.s32.f32 %v548
    %v805 = vcvt.s32.f32 %v549
    %v806 = vcvt.s32.f32 %v550
    %v807 = vcvt.s32.f32 %v551
    %v808 = vcvt.s32.f32 %v552
    %v809 = vcvt.s32.f32 %v553
    %v810 = vcvt.s32.f32 %v554
    %v811 = vcvt.s32.f32 %v555
    %v812 = vcvt.s32.f32 %v556
    %v813 = vcvt.s32.f32 %v557
    %v814 = vcvt.s32.f32 %v558
    %v815 = vcvt.s32.f32 %v559
    %v816 = vcvt.s32.f32 %v560
    %v817 = vcvt.s32.f32 %v561
    %v818 = vcvt.s32.f32 %v562
    %v819 = vcvt.s32.f32 %v563
    %v820 = vcvt.s32.f32 %v564
    %v821 = vcvt.s32.f32 %v565
    %v822 = vcvt.s32.f32 %v566
    %v823 = vcvt.s32.f32 %v567
    %v824 = vcvt.s32.f32 %v568
    %v825 = vcvt.s32.f32 %v569
    %v826 = vcvt.s32.f32 %v570
    %v827 = vcvt.s32.f32 %v571
    %v828 = vcvt.s32.f32 %v572
    %v829 = vcvt.s32.f32 %v573
    %v830 = vcvt.s32.f32 %v574
    %v831 = vcvt.s32.f32 %v575
    %v832 = vcvt.s32.f32 %v576
    %v833 = vcvt.s32.f32 %v577
    %v834 = vcvt.s32.f32 %v578
    %v835 = vcvt.s32.f32 %v579
    %v836 = vcvt.s32.f32 %v580
    %v837 = vcvt.s32.f32 %v581
    %v838 = vcvt.s32.f32 %v582
    %v839 = vcvt.s32.f32 %v583
    %v840 = vcvt.s32.f32 %v584
    %v841 = vcvt.s32.f32 %v585
    %v842 = vcvt.s32.f32 %v586
    %v843 = vcvt.s32.f32 %v587
    %v844 = vcvt.s32.f32 %v588
    %v845 = vcvt.s32.f32 %v589
    %v846 = vcvt.s32.f32 %v590
    %v847 = vcvt.s32.f32 %v591
    %v848 = vcvt.s32.f32 %v592
    %v849 = vcvt.s32.f32 %v593
    %v850 = vcvt.s32.f32 %v594
    %v851 = vcvt.s32.f32 %v595
    %v852 = vcvt.s32.f32 %v596
    %v853 = vcvt.s32.f32 %v597
    %v854 = vcvt.s32.f32 %v598
    %v855 = vcvt.s32.f32 %v599
    %v856 = vcvt.s32.f32 %v600
    %v857 = vcvt.s32.f32 %v601
    %v858 = vcvt.s32.f32 %v602
    %v859 = vcvt.s32.f32 %v603
    %v860 = vcvt.s32.f32 %v604
    %v861 = vcvt.s32.f32 %v605
    %v862 = vcvt.s32.f32 %v606
    %v863 = vcvt.s32.f32 %v607
    %v864 = vcvt.s32.f32 %v608
    %v865 = vcvt.s32.f32 %v609
    %v866 = vcvt.s32.f32 %v610
    %v867 = vcvt.s32.f32 %v611
    %v868 = vcvt.s32.f32 %v612
    %v869 = vcvt.s32.f32 %v613
    %v870 = vcvt.s32.f32 %v614
    %v871 = vcvt.s32.f32 %v615
    %v872 = vcvt.s32.f32 %v616
    %v873 = vcvt.s32.f32 %v617
    %v874 = vcvt.s32.f32 %v618
    %v875 = vcvt.s32.f32 %v619
    %v876 = vcvt.s32.f32 %v620
    %v877 = vcvt.s32.f32 %v621
    %v878 = vcvt.s32.f32 %v622
    %v879 = vcvt.s32.f32 %v623
    %v880 = vcvt.s32.f32 %v624
    %v881 = vcvt.s32.f32 %v625
    %v882 = vcvt.s32.f32 %v626
    %v883 = vcvt.s32.f32 %v627
    %v884 = vcvt.s32.f32 %v628
    %v885 = vcvt.s32.f32 %v629
    %v886 = vcvt.s32.f32 %v630
    %v887 = vcvt.s32.f32 %v631
    %v888 = vcvt.s32.f32 %v632
    %v889 = vcvt.s32.f32 %v633
    %v890 = vcvt.s32.f32 %v634
    %v891 = vcvt.s32.f32 %v635
    %v892 = vcvt.s32.f32 %v636
    %v893 = vcvt.s32.f32 %v637
    %v894 = vcvt.s32.f32 %v638
    %v895 = vcvt.s32.f32 %v639
    %v896 = vcvt.s32.f32 %v640
    %v897 = vcvt.s32.f32 %v641
    %v898 = vcvt.s32.f32 %v642
    %v899 = vcvt.s32.f32 %v643
    %v900 = vcvt.s32.f32 %v644
    %v901 = vcvt.s32.f32 %v645
    %v902 = vcvt.s32.f32 %v646
    %v903 = vcvt.s32.f32 %v647
    %v904 = vcvt.s32.f32 %v648
    %v905 = vcvt.s32.f32 %v649
    %v906 = vcvt.s32.f32 %v650
    %v907 = vcvt.s32.f32 %v651
    %v908 = vcvt.s32.f32 %v652
    %v909 = vcvt.s32.f32 %v653
    %v910 = vcvt.s32.f32 %v654
    %v911 = vcvt.s32.f32 %v655
    %v912 = vcvt.s32.f32 %v656
    %v913 = vcvt.s32.f32 %v657
    %v914 = vcvt.s32.f32 %v658
    %v915 = vcvt.s32.f32 %v659
    %v916 = vcvt.s32.f32 %v660
    %v917 = vcvt.s32.f32 %v661
    %v918 = vcvt.s32.f32 %v662
    %v919 = vcvt.s32.f32 %v663
    %v920 = vpack.c.bf16 %v668, %v664
    %v921 = vpack.c.bf16 %v669, %v665
    %v922 = vpack.c.bf16 %v670, %v666
    %v923 = vpack.c.bf16 %v671, %v667
    %v924 = vpack.c.bf16 %v676, %v672
    %v925 = vpack.c.bf16 %v677, %v673
    %v926 = vpack.c.bf16 %v678, %v674
    %v927 = vpack.c.bf16 %v679, %v675
    %v928 = vpack.c.bf16 %v684, %v680
    %v929 = vpack.c.bf16 %v685, %v681
    %v930 = vpack.c.bf16 %v686, %v682
    %v931 = vpack.c.bf16 %v687, %v683
    %v932 = vpack.c.bf16 %v692, %v688
    %v933 = vpack.c.bf16 %v693, %v689
    %v934 = vpack.c.bf16 %v694, %v690
    %v935 = vpack.c.bf16 %v695, %v691
    %v936 = vpack.c.bf16 %v700, %v696
    %v937 = vpack.c.bf16 %v701, %v697
    %v938 = vpack.c.bf16 %v702, %v698
    %v939 = vpack.c.bf16 %v703, %v699
    %v940 = vpack.c.bf16 %v708, %v704
    %v941 = vpack.c.bf16 %v709, %v705
    %v942 = vpack.c.bf16 %v710, %v706
    %v943 = vpack.c.bf16 %v711, %v707
    %v944 = vpack.c.bf16 %v716, %v712
    %v945 = vpack.c.bf16 %v717, %v713
    %v946 = vpack.c.bf16 %v718, %v714
    %v947 = vpack.c.bf16 %v719, %v715
    %v948 = vpack.c.bf16 %v724, %v720
    %v949 = vpack.c.bf16 %v725, %v721
    %v950 = vpack.c.bf16 %v726, %v722
    %v951 = vpack.c.bf16 %v727, %v723
    %v952 = vpack.c.bf16 %v732, %v728
    %v953 = vpack.c.bf16 %v733, %v729
    %v954 = vpack.c.bf16 %v734, %v730
    %v955 = vpack.c.bf16 %v735, %v731
    %v956 = vpack.c.bf16 %v740, %v736
    %v957 = vpack.c.bf16 %v741, %v737
    %v958 = vpack.c.bf16 %v742, %v738
    %v959 = vpack.c.bf16 %v743, %v739
    %v960 = vpack.c.bf16 %v748, %v744
    %v961 = vpack.c.bf16 %v749, %v745
    %v962 = vpack.c.bf16 %v750, %v746
    %v963 = vpack.c.bf16 %v751, %v747
    %v964 = vpack.c.bf16 %v756, %v752
    %v965 = vpack.c.bf16 %v757, %v753
    %v966 = vpack.c.bf16 %v758, %v754
    %v967 = vpack.c.bf16 %v759, %v755
    %v968 = vpack.c.bf16 %v764, %v760
    %v969 = vpack.c.bf16 %v765, %v761
    %v970 = vpack.c.bf16 %v766, %v762
    %v971 = vpack.c.bf16 %v767, %v763
    %v972 = vpack.c.bf16 %v772, %v768
    %v973 = vpack.c.bf16 %v773, %v769
    %v974 = vpack.c.bf16 %v774, %v770
    %v975 = vpack.c.bf16 %v775, %v771
    %v976 = vpack.c.bf16 %v780, %v776
    %v977 = vpack.c.bf16 %v781, %v777
    %v978 = vpack.c.bf16 %v782, %v778
    %v979 = vpack.c.bf16 %v783, %v779
    %v980 = vpack.c.bf16 %v788, %v784
    %v981 = vpack.c.bf16 %v789, %v785
    %v982 = vpack.c.bf16 %v790, %v786
    %v983 = vpack.c.bf16 %v791, %v787
    %v984 = vpack.c.bf16 %v796, %v792
    %v985 = vpack.c.bf16 %v797, %v793
    %v986 = vpack.c.bf16 %v798, %v794
    %v987 = vpack.c.bf16 %v799, %v795
    %v988 = vpack.c.bf16 %v804, %v800
    %v989 = vpack.c.bf16 %v805, %v801
    %v990 = vpack.c.bf16 %v806, %v802
    %v991 = vpack.c.bf16 %v807, %v803
    %v992 = vpack.c.bf16 %v812, %v808
    %v993 = vpack.c.bf16 %v813, %v809
    %v994 = vpack.c.bf16 %v814, %v810
    %v995 = vpack.c.bf16 %v815, %v811
    %v996 = vpack.c.bf16 %v820, %v816
    %v997 = vpack.c.bf16 %v821, %v817
    %v998 = vpack.c.bf16 %v822, %v818
    %v999 = vpack.c.bf16 %v823, %v819
    %v1000 = vpack.c.bf16 %v828, %v824
    %v1001 = vpack.c.bf16 %v829, %v825
    %v1002 = vpack.c.bf16 %v830, %v826
    %v1003 = vpack.c.bf16 %v831, %v827
    %v1004 = vpack.c.bf16 %v836, %v832
    %v1005 = vpack.c.bf16 %v837, %v833
    %v1006 = vpack.c.bf16 %v838, %v834
    %v1007 = vpack.c.bf16 %v839, %v835
    %v1008 = vpack.c.bf16 %v844, %v840
    %v1009 = vpack.c.bf16 %v845, %v841
    %v1010 = vpack.c.bf16 %v846, %v842
    %v1011 = vpack.c.bf16 %v847, %v843
    %v1012 = vpack.c.bf16 %v852, %v848
    %v1013 = vpack.c.bf16 %v853, %v849
    %v1014 = vpack.c.bf16 %v854, %v850
    %v1015 = vpack.c.bf16 %v855, %v851
    %v1016 = vpack.c.bf16 %v860, %v856
    %v1017 = vpack.c.bf16 %v861, %v857
    %v1018 = vpack.c.bf16 %v862, %v858
    %v1019 = vpack.c.bf16 %v863, %v859
    %v1020 = vpack.c.bf16 %v868, %v864
    %v1021 = vpack.c.bf16 %v869, %v865
    %v1022 = vpack.c.bf16 %v870, %v866
    %v1023 = vpack.c.bf16 %v871, %v867
    %v1024 = vpack.c.bf16 %v876, %v872
    %v1025 = vpack.c.bf16 %v877, %v873
    %v1026 = vpack.c.bf16 %v878, %v874
    %v1027 = vpack.c.bf16 %v879, %v875
    %v1028 = vpack.c.bf16 %v884, %v880
    %v1029 = vpack.c.bf16 %v885, %v881
    %v1030 = vpack.c.bf16 %v886, %v882
    %v1031 = vpack.c.bf16 %v887, %v883
    %v1032 = vpack.c.bf16 %v892, %v888
    %v1033 = vpack.c.bf16 %v893, %v889
    %v1034 = vpack.c.bf16 %v894, %v890
    %v1035 = vpack.c.bf16 %v895, %v891
    %v1036 = vpack.c.bf16 %v900, %v896
    %v1037 = vpack.c.bf16 %v901, %v897
    %v1038 = vpack.c.bf16 %v902, %v898
    %v1039 = vpack.c.bf16 %v903, %v899
    %v1040 = vpack.c.bf16 %v908, %v904
    %v1041 = vpack.c.bf16 %v909, %v905
    %v1042 = vpack.c.bf16 %v910, %v906
    %v1043 = vpack.c.bf16 %v911, %v907
    %v1044 = vpack.c.bf16 %v916, %v912
    %v1045 = vpack.c.bf16 %v917, %v913
    %v1046 = vpack.c.bf16 %v918, %v914
    %v1047 = vpack.c.bf16 %v919, %v915
    %v1048 = vpack.c.bf16 %v340, %v340
    %v1049 = vpack.c.bf16 %v341, %v341
    %v1050 = vpack.c.bf16 %v342, %v342
    %v1051 = vpack.c.bf16 %v343, %v343
    %1052 = vmatpush.bf16.msra.mxu0 %v948
    %1053 = vmatpush.bf16.msra.mxu0 %v944
    %1054 = vmatpush.bf16.msra.mxu0 %v940
    %1055 = vmatpush.bf16.msra.mxu0 %v936
    %1056 = vmatpush.bf16.msra.mxu0 %v932
    %1057 = vmatpush.bf16.msra.mxu0 %v928
    %1058 = vmatpush.bf16.msra.mxu0 %v924
    %1059 = vmatpush.bf16.msra.mxu0 %v920
    %1060 = vmatmul.bf16.gmra.mxu0 %v1048
    %v1061 = vpop.f32.mrf.mxu0
    %v1062 = vadd.f32 0.0, %v1061
    %v1063 = vpop.f32.mrf.mxu0
    %1064 = vdwg.mxu0
    %1065 = vmatpush.bf16.msra.mxu0 %v980
    %1066 = vmatpush.bf16.msra.mxu0 %v976
    %1067 = vmatpush.bf16.msra.mxu0 %v972
    %1068 = vmatpush.bf16.msra.mxu0 %v968
    %1069 = vmatpush.bf16.msra.mxu0 %v964
    %1070 = vmatpush.bf16.msra.mxu0 %v960
    %1071 = vmatpush.bf16.msra.mxu0 %v956
    %1072 = vmatpush.bf16.msra.mxu0 %v952
    %1073 = vmatmul.bf16.gmra.mxu0 %v1049
    %v1074 = vpop.f32.mrf.mxu0
    %v1075 = vadd.f32 %v1062, %v1074
    %v1076 = vpop.f32.mrf.mxu0
    %1077 = vdwg.mxu0
    %1078 = vmatpush.bf16.msra.mxu0 %v1012
    %1079 = vmatpush.bf16.msra.mxu0 %v1008
    %1080 = vmatpush.bf16.msra.mxu0 %v1004
    %1081 = vmatpush.bf16.msra.mxu0 %v1000
    %1082 = vmatpush.bf16.msra.mxu0 %v996
    %1083 = vmatpush.bf16.msra.mxu0 %v992
    %1084 = vmatpush.bf16.msra.mxu0 %v988
    %1085 = vmatpush.bf16.msra.mxu0 %v984
    %1086 = vmatmul.bf16.gmra.mxu0 %v1050
    %v1087 = vpop.f32.mrf.mxu0
    %v1088 = vadd.f32 %v1075, %v1087
    %v1089 = vpop.f32.mrf.mxu0
    %1090 = vdwg.mxu0
    %1091 = vmatpush.bf16.msra.mxu0 %v1044
    %1092 = vmatpush.bf16.msra.mxu0 %v1040
    %1093 = vmatpush.bf16.msra.mxu0 %v1036
    %1094 = vmatpush.bf16.msra.mxu0 %v1032
    %1095 = vmatpush.bf16.msra.mxu0 %v1028
    %1096 = vmatpush.bf16.msra.mxu0 %v1024
    %1097 = vmatpush.bf16.msra.mxu0 %v1020
    %1098 = vmatpush.bf16.msra.mxu0 %v1016
    %1099 = vmatmul.bf16.gmra.mxu0 %v1051
    %v1100 = vpop.f32.mrf.mxu0
    %v1101 = vadd.f32 %v1088, %v1100
    %v1102 = vpop.f32.mrf.mxu0
    %1103 = vdwg.mxu0
    %1104 = vmatpush.bf16.msra.mxu0 %v949
    %1105 = vmatpush.bf16.msra.mxu0 %v945
    %1106 = vmatpush.bf16.msra.mxu0 %v941
    %1107 = vmatpush.bf16.msra.mxu0 %v937
    %1108 = vmatpush.bf16.msra.mxu0 %v933
    %1109 = vmatpush.bf16.msra.mxu0 %v929
    %1110 = vmatpush.bf16.msra.mxu0 %v925
    %1111 = vmatpush.bf16.msra.mxu0 %v921
    %1112 = vmatmul.bf16.gmra.mxu0 %v1048
    %v1113 = vpop.f32.mrf.mxu0
    %v1114 = vadd.f32 0.0, %v1113
    %v1115 = vpop.f32.mrf.mxu0
    %1116 = vdwg.mxu0
    %1117 = vmatpush.bf16.msra.mxu0 %v981
    %1118 = vmatpush.bf16.msra.mxu0 %v977
    %1119 = vmatpush.bf16.msra.mxu0 %v973
    %1120 = vmatpush.bf16.msra.mxu0 %v969
    %1121 = vmatpush.bf16.msra.mxu0 %v965
    %1122 = vmatpush.bf16.msra.mxu0 %v961
    %1123 = vmatpush.bf16.msra.mxu0 %v957
    %1124 = vmatpush.bf16.msra.mxu0 %v953
    %1125 = vmatmul.bf16.gmra.mxu0 %v1049
    %v1126 = vpop.f32.mrf.mxu0
    %v1127 = vadd.f32 %v1114, %v1126
    %v1128 = vpop.f32.mrf.mxu0
    %1129 = vdwg.mxu0
    %1130 = vmatpush.bf16.msra.mxu0 %v1013
    %1131 = vmatpush.bf16.msra.mxu0 %v1009
    %1132 = vmatpush.bf16.msra.mxu0 %v1005
    %1133 = vmatpush.bf16.msra.mxu0 %v1001
    %1134 = vmatpush.bf16.msra.mxu0 %v997
    %1135 = vmatpush.bf16.msra.mxu0 %v993
    %1136 = vmatpush.bf16.msra.mxu0 %v989
    %1137 = vmatpush.bf16.msra.mxu0 %v985
    %1138 = vmatmul.bf16.gmra.mxu0 %v1050
    %v1139 = vpop.f32.mrf.mxu0
    %v1140 = vadd.f32 %v1127, %v1139
    %v1141 = vpop.f32.mrf.mxu0
    %1142 = vdwg.mxu0
    %1143 = vmatpush.bf16.msra.mxu0 %v1045
    %1144 = vmatpush.bf16.msra.mxu0 %v1041
    %1145 = vmatpush.bf16.msra.mxu0 %v1037
    %1146 = vmatpush.bf16.msra.mxu0 %v1033
    %1147 = vmatpush.bf16.msra.mxu0 %v1029
    %1148 = vmatpush.bf16.msra.mxu0 %v1025
    %1149 = vmatpush.bf16.msra.mxu0 %v1021
    %1150 = vmatpush.bf16.msra.mxu0 %v1017
    %1151 = vmatmul.bf16.gmra.mxu0 %v1051
    %v1152 = vpop.f32.mrf.mxu0
    %v1153 = vadd.f32 %v1140, %v1152
    %v1154 = vpop.f32.mrf.mxu0
    %1155 = vdwg.mxu0
    %1156 = vmatpush.bf16.msra.mxu0 %v950
    %1157 = vmatpush.bf16.msra.mxu0 %v946
    %1158 = vmatpush.bf16.msra.mxu0 %v942
    %1159 = vmatpush.bf16.msra.mxu0 %v938
    %1160 = vmatpush.bf16.msra.mxu0 %v934
    %1161 = vmatpush.bf16.msra.mxu0 %v930
    %1162 = vmatpush.bf16.msra.mxu0 %v926
    %1163 = vmatpush.bf16.msra.mxu0 %v922
    %1164 = vmatmul.bf16.gmra.mxu0 %v1048
    %v1165 = vpop.f32.mrf.mxu0
    %v1166 = vadd.f32 0.0, %v1165
    %v1167 = vpop.f32.mrf.mxu0
    %1168 = vdwg.mxu0
    %1169 = vmatpush.bf16.msra.mxu0 %v982
    %1170 = vmatpush.bf16.msra.mxu0 %v978
    %1171 = vmatpush.bf16.msra.mxu0 %v974
    %1172 = vmatpush.bf16.msra.mxu0 %v970
    %1173 = vmatpush.bf16.msra.mxu0 %v966
    %1174 = vmatpush.bf16.msra.mxu0 %v962
    %1175 = vmatpush.bf16.msra.mxu0 %v958
    %1176 = vmatpush.bf16.msra.mxu0 %v954
    %1177 = vmatmul.bf16.gmra.mxu0 %v1049
    %v1178 = vpop.f32.mrf.mxu0
    %v1179 = vadd.f32 %v1166, %v1178
    %v1180 = vpop.f32.mrf.mxu0
    %1181 = vdwg.mxu0
    %1182 = vmatpush.bf16.msra.mxu0 %v1014
    %1183 = vmatpush.bf16.msra.mxu0 %v1010
    %1184 = vmatpush.bf16.msra.mxu0 %v1006
    %1185 = vmatpush.bf16.msra.mxu0 %v1002
    %1186 = vmatpush.bf16.msra.mxu0 %v998
    %1187 = vmatpush.bf16.msra.mxu0 %v994
    %1188 = vmatpush.bf16.msra.mxu0 %v990
    %1189 = vmatpush.bf16.msra.mxu0 %v986
    %1190 = vmatmul.bf16.gmra.mxu0 %v1050
    %v1191 = vpop.f32.mrf.mxu0
    %v1192 = vadd.f32 %v1179, %v1191
    %v1193 = vpop.f32.mrf.mxu0
    %1194 = vdwg.mxu0
    %1195 = vmatpush.bf16.msra.mxu0 %v1046
    %1196 = vmatpush.bf16.msra.mxu0 %v1042
    %1197 = vmatpush.bf16.msra.mxu0 %v1038
    %1198 = vmatpush.bf16.msra.mxu0 %v1034
    %1199 = vmatpush.bf16.msra.mxu0 %v1030
    %1200 = vmatpush.bf16.msra.mxu0 %v1026
    %1201 = vmatpush.bf16.msra.mxu0 %v1022
    %1202 = vmatpush.bf16.msra.mxu0 %v1018
    %1203 = vmatmul.bf16.gmra.mxu0 %v1051
    %v1204 = vpop.f32.mrf.mxu0
    %v1205 = vadd.f32 %v1192, %v1204
    %v1206 = vpop.f32.mrf.mxu0
    %1207 = vdwg.mxu0
    %1208 = vmatpush.bf16.msra.mxu0 %v951
    %1209 = vmatpush.bf16.msra.mxu0 %v947
    %1210 = vmatpush.bf16.msra.mxu0 %v943
    %1211 = vmatpush.bf16.msra.mxu0 %v939
    %1212 = vmatpush.bf16.msra.mxu0 %v935
    %1213 = vmatpush.bf16.msra.mxu0 %v931
    %1214 = vmatpush.bf16.msra.mxu0 %v927
    %1215 = vmatpush.bf16.msra.mxu0 %v923
    %1216 = vmatmul.bf16.gmra.mxu0 %v1048
    %v1217 = vpop.f32.mrf.mxu0
    %v1218 = vadd.f32 0.0, %v1217
    %v1219 = vpop.f32.mrf.mxu0
    %1220 = vdwg.mxu0
    %1221 = vmatpush.bf16.msra.mxu0 %v983
    %1222 = vmatpush.bf16.msra.mxu0 %v979
    %1223 = vmatpush.bf16.msra.mxu0 %v975
    %1224 = vmatpush.bf16.msra.mxu0 %v971
    %1225 = vmatpush.bf16.msra.mxu0 %v967
    %1226 = vmatpush.bf16.msra.mxu0 %v963
    %1227 = vmatpush.bf16.msra.mxu0 %v959
    %1228 = vmatpush.bf16.msra.mxu0 %v955
    %1229 = vmatmul.bf16.gmra.mxu0 %v1049
    %v1230 = vpop.f32.mrf.mxu0
    %v1231 = vadd.f32 %v1218, %v1230
    %v1232 = vpop.f32.mrf.mxu0
    %1233 = vdwg.mxu0
    %1234 = vmatpush.bf16.msra.mxu0 %v1015
    %1235 = vmatpush.bf16.msra.mxu0 %v1011
    %1236 = vmatpush.bf16.msra.mxu0 %v1007
    %1237 = vmatpush.bf16.msra.mxu0 %v1003
    %1238 = vmatpush.bf16.msra.mxu0 %v999
    %1239 = vmatpush.bf16.msra.mxu0 %v995
    %1240 = vmatpush.bf16.msra.mxu0 %v991
    %1241 = vmatpush.bf16.msra.mxu0 %v987
    %1242 = vmatmul.bf16.gmra.mxu0 %v1050
    %v1243 = vpop.f32.mrf.mxu0
    %v1244 = vadd.f32 %v1231, %v1243
    %v1245 = vpop.f32.mrf.mxu0
    %1246 = vdwg.mxu0
    %1247 = vmatpush.bf16.msra.mxu0 %v1047
    %1248 = vmatpush.bf16.msra.mxu0 %v1043
    %1249 = vmatpush.bf16.msra.mxu0 %v1039
    %1250 = vmatpush.bf16.msra.mxu0 %v1035
    %1251 = vmatpush.bf16.msra.mxu0 %v1031
    %1252 = vmatpush.bf16.msra.mxu0 %v1027
    %1253 = vmatpush.bf16.msra.mxu0 %v1023
    %1254 = vmatpush.bf16.msra.mxu0 %v1019
    %1255 = vmatmul.bf16.gmra.mxu0 %v1051
    %v1256 = vpop.f32.mrf.mxu0
    %v1257 = vadd.f32 %v1244, %v1256
    %v1258 = vpop.f32.mrf.mxu0
    %1259 = vdwg.mxu0
    %v1260 = vrot.slane %v1101, 4
    %v1261 = vadd.f32 %v1101, %v1260
    %v1262 = vrot.slane %v1261, 2
    %v1263 = vadd.f32 %v1261, %v1262
    %v1264 = vrot.slane %v1263, 1
    %v1265 = vadd.f32 %v1263, %v1264
    %v1266 = vrot.slane %v1153, 4
    %v1267 = vadd.f32 %v1153, %v1266
    %v1268 = vrot.slane %v1267, 2
    %v1269 = vadd.f32 %v1267, %v1268
    %v1270 = vrot.slane %v1269, 1
    %v1271 = vadd.f32 %v1269, %v1270
    %v1272 = vrot.slane %v1205, 4
    %v1273 = vadd.f32 %v1205, %v1272
    %v1274 = vrot.slane %v1273, 2
    %v1275 = vadd.f32 %v1273, %v1274
    %v1276 = vrot.slane %v1275, 1
    %v1277 = vadd.f32 %v1275, %v1276
    %v1278 = vrot.slane %v1257, 4
    %v1279 = vadd.f32 %v1257, %v1278
    %v1280 = vrot.slane %v1279, 2
    %v1281 = vadd.f32 %v1279, %v1280
    %v1282 = vrot.slane %v1281, 1
    %v1283 = vadd.f32 %v1281, %v1282
    %v1284 = vmul.f32 %v1265, %v180
    %v1285 = vmul.f32 %v1271, %v180
    %v1286 = vmul.f32 %v1277, %v180
    %v1287 = vmul.f32 %v1283, %v180
    %v1288 = vmul.f32 %v1101, %v1101
    %v1289 = vmul.f32 %v1153, %v1153
    %v1290 = vmul.f32 %v1205, %v1205
    %v1291 = vmul.f32 %v1257, %v1257
    %v1292 = vrot.slane %v1288, 4
    %v1293 = vadd.f32 %v1288, %v1292
    %v1294 = vrot.slane %v1293, 2
    %v1295 = vadd.f32 %v1293, %v1294
    %v1296 = vrot.slane %v1295, 1
    %v1297 = vadd.f32 %v1295, %v1296
    %v1298 = vrot.slane %v1289, 4
    %v1299 = vadd.f32 %v1289, %v1298
    %v1300 = vrot.slane %v1299, 2
    %v1301 = vadd.f32 %v1299, %v1300
    %v1302 = vrot.slane %v1301, 1
    %v1303 = vadd.f32 %v1301, %v1302
    %v1304 = vrot.slane %v1290, 4
    %v1305 = vadd.f32 %v1290, %v1304
    %v1306 = vrot.slane %v1305, 2
    %v1307 = vadd.f32 %v1305, %v1306
    %v1308 = vrot.slane %v1307, 1
    %v1309 = vadd.f32 %v1307, %v1308
    %v1310 = vrot.slane %v1291, 4
    %v1311 = vadd.f32 %v1291, %v1310
    %v1312 = vrot.slane %v1311, 2
    %v1313 = vadd.f32 %v1311, %v1312
    %v1314 = vrot.slane %v1313, 1
    %v1315 = vadd.f32 %v1313, %v1314
    %v1316 = vmul.f32 %v1297, %v180
    %v1317 = vmul.f32 %v1303, %v180
    %v1318 = vmul.f32 %v1309, %v180
    %v1319 = vmul.f32 %v1315, %v180
    %v1320 = vmul.f32 %v1284, %v1284
    %v1321 = vmul.f32 %v1285, %v1285
    %v1322 = vmul.f32 %v1286, %v1286
    %v1323 = vmul.f32 %v1287, %v1287
    %v1324 = vsub.f32 %v1316, %v1320
    %v1325 = vsub.f32 %v1317, %v1321
    %v1326 = vsub.f32 %v1318, %v1322
    %v1327 = vsub.f32 %v1319, %v1323
    %v1328 = vmax.f32 %v1324, 0.0
    %v1329 = vmax.f32 %v1325, 0.0
    %v1330 = vmax.f32 %v1326, 0.0
    %v1331 = vmax.f32 %v1327, 0.0
    %v1332 = vadd.f32 %v1328, 1e-05
    %v1333 = vadd.f32 %v1329, 1e-05
    %v1334 = vadd.f32 %v1330, 1e-05
    %v1335 = vadd.f32 %v1331, 1e-05
    %v1336 = vrsqrt.pop %v1332
    %v1337 = vmul.f32 %v1336, %v1332
    %v1338 = vmul.f32 %v1337, %v1336
    %v1339 = vmul.f32 0.5, %v1338
    %v1340 = vsub.f32 1.5, %v1339
    %v1341 = vmul.f32 %v1336, %v1340
    %vm1342 = vweird.f32 %v1332
    %vm1343 = vweird.f32 %v1336
    %vm1344 = vmor %vm1342, %vm1343
    %v1345 = vsel %vm1344, %v1336, %v1341
    %v1346 = vrsqrt.pop %v1333
    %v1347 = vmul.f32 %v1346, %v1333
    %v1348 = vmul.f32 %v1347, %v1346
    %v1349 = vmul.f32 0.5, %v1348
    %v1350 = vsub.f32 1.5, %v1349
    %v1351 = vmul.f32 %v1346, %v1350
    %vm1352 = vweird.f32 %v1333
    %vm1353 = vweird.f32 %v1346
    %vm1354 = vmor %vm1352, %vm1353
    %v1355 = vsel %vm1354, %v1346, %v1351
    %v1356 = vrsqrt.pop %v1334
    %v1357 = vmul.f32 %v1356, %v1334
    %v1358 = vmul.f32 %v1357, %v1356
    %v1359 = vmul.f32 0.5, %v1358
    %v1360 = vsub.f32 1.5, %v1359
    %v1361 = vmul.f32 %v1356, %v1360
    %vm1362 = vweird.f32 %v1334
    %vm1363 = vweird.f32 %v1356
    %vm1364 = vmor %vm1362, %vm1363
    %v1365 = vsel %vm1364, %v1356, %v1361
    %v1366 = vrsqrt.pop %v1335
    %v1367 = vmul.f32 %v1366, %v1335
    %v1368 = vmul.f32 %v1367, %v1366
    %v1369 = vmul.f32 0.5, %v1368
    %v1370 = vsub.f32 1.5, %v1369
    %v1371 = vmul.f32 %v1366, %v1370
    %vm1372 = vweird.f32 %v1335
    %vm1373 = vweird.f32 %v1366
    %vm1374 = vmor %vm1372, %vm1373
    %v1375 = vsel %vm1374, %v1366, %v1371
    %v1380 = vrot.slane %v1355, 4
    %v1381 = vrot.slane %v1375, 4
    %v1382 = vsel %vm279, %v1345, %v1380
    %v1383 = vsel %vm279, %v1365, %v1381
    %v1384 = vrot.slane %v1382, 6
    %v1385 = vrot.slane %v1383, 6
    %v1388 = vmul.f32 %v41, %v1384
    %v1389 = vmul.f32 %v42, %v1385
    %v1392 = vperm.slane %v1388, 2
    %v1393 = vperm.slane %v1388, 6
    %v1394 = vperm.slane %v1389, 2
    %v1395 = vperm.slane %v1389, 6
    %v1400 = vmul.f32 %v1284, %v1392
    %v1401 = vmul.f32 %v1285, %v1393
    %v1402 = vmul.f32 %v1286, %v1394
    %v1403 = vmul.f32 %v1287, %v1395
    %v1408 = vrot.slane %v1401, 4
    %v1409 = vrot.slane %v1403, 4
    %v1410 = vsel %vm279, %v1400, %v1408
    %v1411 = vsel %vm279, %v1402, %v1409
    %v1412 = vrot.slane %v1410, 5
    %v1413 = vrot.slane %v1411, 5
    %v1416 = vsub.f32 %v41, %v1412
    %v1417 = vsub.f32 %v42, %v1413
    %v1418 = vperm.slane %v1392, 2
    %v1419 = vperm.slane %v1393, 2
    %v1420 = vperm.slane %v1394, 2
    %v1421 = vperm.slane %v1395, 2
    %v1422 = vmul.f32 %v1101, %v1418
    %v1423 = vmul.f32 %v1153, %v1419
    %v1424 = vmul.f32 %v1205, %v1420
    %v1425 = vmul.f32 %v1257, %v1421
    %v1428 = vperm.slane %v1416, 3
    %v1429 = vperm.slane %v1416, 7
    %v1430 = vperm.slane %v1417, 3
    %v1431 = vperm.slane %v1417, 7
    %v1436 = vperm.slane %v1428, 3
    %v1437 = vperm.slane %v1429, 3
    %v1438 = vperm.slane %v1430, 3
    %v1439 = vperm.slane %v1431, 3
    %v1440 = vadd.f32 %v1422, %v1436
    %v1441 = vadd.f32 %v1423, %v1437
    %v1442 = vadd.f32 %v1424, %v1438
    %v1443 = vadd.f32 %v1425, %v1439
    %v1444 = vmax.f32 %v1440, 0.0
    %v1445 = vmax.f32 %v1441, 0.0
    %v1446 = vmax.f32 %v1442, 0.0
    %v1447 = vmax.f32 %v1443, 0.0
    %v1448 = vpack.c.bf16 %v1444, %v1444
    %v1449 = vpack.c.bf16 %v1445, %v1445
    %v1450 = vpack.c.bf16 %v1446, %v1446
    %v1451 = vpack.c.bf16 %v1447, %v1447
    %v1452 = vld [vmem:[%s4] sm:$0xf]
    %v1453 = vld [vmem:[%s4 + $0x4] sm:$0xf]
    %v1454 = vld [vmem:[%s4 + $0x8] sm:$0xf]
    %v1455 = vld [vmem:[%s4 + $0xc] sm:$0xf]
    %v1456 = vld [vmem:[%s4 + $0x10] sm:$0xf]
    %v1457 = vld [vmem:[%s4 + $0x14] sm:$0xf]
    %v1458 = vld [vmem:[%s4 + $0x18] sm:$0xf]
    %v1459 = vld [vmem:[%s4 + $0x1c] sm:$0xf]
    %v1460 = vld [vmem:[%s4 + $0x20] sm:$0xf]
    %v1461 = vld [vmem:[%s4 + $0x24] sm:$0xf]
    %v1462 = vld [vmem:[%s4 + $0x28] sm:$0xf]
    %v1463 = vld [vmem:[%s4 + $0x2c] sm:$0xf]
    %v1464 = vld [vmem:[%s4 + $0x30] sm:$0xf]
    %v1465 = vld [vmem:[%s4 + $0x34] sm:$0xf]
    %v1466 = vld [vmem:[%s4 + $0x38] sm:$0xf]
    %v1467 = vld [vmem:[%s4 + $0x3c] sm:$0xf]
    %v1468 = vld [vmem:[%s4 + $0x40] sm:$0xf]
    %v1469 = vld [vmem:[%s4 + $0x44] sm:$0xf]
    %v1470 = vld [vmem:[%s4 + $0x48] sm:$0xf]
    %v1471 = vld [vmem:[%s4 + $0x4c] sm:$0xf]
    %v1472 = vld [vmem:[%s4 + $0x50] sm:$0xf]
    %v1473 = vld [vmem:[%s4 + $0x54] sm:$0xf]
    %v1474 = vld [vmem:[%s4 + $0x58] sm:$0xf]
    %v1475 = vld [vmem:[%s4 + $0x5c] sm:$0xf]
    %v1476 = vld [vmem:[%s4 + $0x60] sm:$0xf]
    %v1477 = vld [vmem:[%s4 + $0x64] sm:$0xf]
    %v1478 = vld [vmem:[%s4 + $0x68] sm:$0xf]
    %v1479 = vld [vmem:[%s4 + $0x6c] sm:$0xf]
    %v1480 = vld [vmem:[%s4 + $0x70] sm:$0xf]
    %v1481 = vld [vmem:[%s4 + $0x74] sm:$0xf]
    %v1482 = vld [vmem:[%s4 + $0x78] sm:$0xf]
    %v1483 = vld [vmem:[%s4 + $0x7c] sm:$0xf]
    %v1484 = vld [vmem:[%s4 + $0x80] sm:$0xf]
    %v1485 = vld [vmem:[%s4 + $0x84] sm:$0xf]
    %v1486 = vld [vmem:[%s4 + $0x88] sm:$0xf]
    %v1487 = vld [vmem:[%s4 + $0x8c] sm:$0xf]
    %v1488 = vld [vmem:[%s4 + $0x90] sm:$0xf]
    %v1489 = vld [vmem:[%s4 + $0x94] sm:$0xf]
    %v1490 = vld [vmem:[%s4 + $0x98] sm:$0xf]
    %v1491 = vld [vmem:[%s4 + $0x9c] sm:$0xf]
    %v1492 = vld [vmem:[%s4 + $0xa0] sm:$0xf]
    %v1493 = vld [vmem:[%s4 + $0xa4] sm:$0xf]
    %v1494 = vld [vmem:[%s4 + $0xa8] sm:$0xf]
    %v1495 = vld [vmem:[%s4 + $0xac] sm:$0xf]
    %v1496 = vld [vmem:[%s4 + $0xb0] sm:$0xf]
    %v1497 = vld [vmem:[%s4 + $0xb4] sm:$0xf]
    %v1498 = vld [vmem:[%s4 + $0xb8] sm:$0xf]
    %v1499 = vld [vmem:[%s4 + $0xbc] sm:$0xf]
    %v1500 = vld [vmem:[%s4 + $0xc0] sm:$0xf]
    %v1501 = vld [vmem:[%s4 + $0xc4] sm:$0xf]
    %v1502 = vld [vmem:[%s4 + $0xc8] sm:$0xf]
    %v1503 = vld [vmem:[%s4 + $0xcc] sm:$0xf]
    %v1504 = vld [vmem:[%s4 + $0xd0] sm:$0xf]
    %v1505 = vld [vmem:[%s4 + $0xd4] sm:$0xf]
    %v1506 = vld [vmem:[%s4 + $0xd8] sm:$0xf]
    %v1507 = vld [vmem:[%s4 + $0xdc] sm:$0xf]
    %v1508 = vld [vmem:[%s4 + $0xe0] sm:$0xf]
    %v1509 = vld [vmem:[%s4 + $0xe4] sm:$0xf]
    %v1510 = vld [vmem:[%s4 + $0xe8] sm:$0xf]
    %v1511 = vld [vmem:[%s4 + $0xec] sm:$0xf]
    %v1512 = vld [vmem:[%s4 + $0xf0] sm:$0xf]
    %v1513 = vld [vmem:[%s4 + $0xf4] sm:$0xf]
    %v1514 = vld [vmem:[%s4 + $0xf8] sm:$0xf]
    %v1515 = vld [vmem:[%s4 + $0xfc] sm:$0xf]
    %v1516 = vld [vmem:[%s5] sm:$0x1]
    %v1518 = vperm.slane %v1516, 0
    %v1584 = vunpack.c.l.b16 %v1452
    %v1585 = vunpack.c.l.b16 %v1453
    %v1586 = vunpack.c.l.b16 %v1454
    %v1587 = vunpack.c.l.b16 %v1455
    %v1588 = vunpack.c.l.b16 %v1456
    %v1589 = vunpack.c.l.b16 %v1457
    %v1590 = vunpack.c.l.b16 %v1458
    %v1591 = vunpack.c.l.b16 %v1459
    %v1592 = vunpack.c.l.b16 %v1460
    %v1593 = vunpack.c.l.b16 %v1461
    %v1594 = vunpack.c.l.b16 %v1462
    %v1595 = vunpack.c.l.b16 %v1463
    %v1596 = vunpack.c.l.b16 %v1464
    %v1597 = vunpack.c.l.b16 %v1465
    %v1598 = vunpack.c.l.b16 %v1466
    %v1599 = vunpack.c.l.b16 %v1467
    %v1600 = vunpack.c.l.b16 %v1468
    %v1601 = vunpack.c.l.b16 %v1469
    %v1602 = vunpack.c.l.b16 %v1470
    %v1603 = vunpack.c.l.b16 %v1471
    %v1604 = vunpack.c.l.b16 %v1472
    %v1605 = vunpack.c.l.b16 %v1473
    %v1606 = vunpack.c.l.b16 %v1474
    %v1607 = vunpack.c.l.b16 %v1475
    %v1608 = vunpack.c.l.b16 %v1476
    %v1609 = vunpack.c.l.b16 %v1477
    %v1610 = vunpack.c.l.b16 %v1478
    %v1611 = vunpack.c.l.b16 %v1479
    %v1612 = vunpack.c.l.b16 %v1480
    %v1613 = vunpack.c.l.b16 %v1481
    %v1614 = vunpack.c.l.b16 %v1482
    %v1615 = vunpack.c.l.b16 %v1483
    %v1616 = vunpack.c.l.b16 %v1484
    %v1617 = vunpack.c.l.b16 %v1485
    %v1618 = vunpack.c.l.b16 %v1486
    %v1619 = vunpack.c.l.b16 %v1487
    %v1620 = vunpack.c.l.b16 %v1488
    %v1621 = vunpack.c.l.b16 %v1489
    %v1622 = vunpack.c.l.b16 %v1490
    %v1623 = vunpack.c.l.b16 %v1491
    %v1624 = vunpack.c.l.b16 %v1492
    %v1625 = vunpack.c.l.b16 %v1493
    %v1626 = vunpack.c.l.b16 %v1494
    %v1627 = vunpack.c.l.b16 %v1495
    %v1628 = vunpack.c.l.b16 %v1496
    %v1629 = vunpack.c.l.b16 %v1497
    %v1630 = vunpack.c.l.b16 %v1498
    %v1631 = vunpack.c.l.b16 %v1499
    %v1632 = vunpack.c.l.b16 %v1500
    %v1633 = vunpack.c.l.b16 %v1501
    %v1634 = vunpack.c.l.b16 %v1502
    %v1635 = vunpack.c.l.b16 %v1503
    %v1636 = vunpack.c.l.b16 %v1504
    %v1637 = vunpack.c.l.b16 %v1505
    %v1638 = vunpack.c.l.b16 %v1506
    %v1639 = vunpack.c.l.b16 %v1507
    %v1640 = vunpack.c.l.b16 %v1508
    %v1641 = vunpack.c.l.b16 %v1509
    %v1642 = vunpack.c.l.b16 %v1510
    %v1643 = vunpack.c.l.b16 %v1511
    %v1644 = vunpack.c.l.b16 %v1512
    %v1645 = vunpack.c.l.b16 %v1513
    %v1646 = vunpack.c.l.b16 %v1514
    %v1647 = vunpack.c.l.b16 %v1515
    %v1648 = vpack.c.b16 %v1585, %v1584
    %v1649 = vpack.c.b16 %v1587, %v1586
    %v1650 = vpack.c.b16 %v1589, %v1588
    %v1651 = vpack.c.b16 %v1591, %v1590
    %v1652 = vpack.c.b16 %v1593, %v1592
    %v1653 = vpack.c.b16 %v1595, %v1594
    %v1654 = vpack.c.b16 %v1597, %v1596
    %v1655 = vpack.c.b16 %v1599, %v1598
    %v1656 = vpack.c.b16 %v1601, %v1600
    %v1657 = vpack.c.b16 %v1603, %v1602
    %v1658 = vpack.c.b16 %v1605, %v1604
    %v1659 = vpack.c.b16 %v1607, %v1606
    %v1660 = vpack.c.b16 %v1609, %v1608
    %v1661 = vpack.c.b16 %v1611, %v1610
    %v1662 = vpack.c.b16 %v1613, %v1612
    %v1663 = vpack.c.b16 %v1615, %v1614
    %v1664 = vpack.c.b16 %v1617, %v1616
    %v1665 = vpack.c.b16 %v1619, %v1618
    %v1666 = vpack.c.b16 %v1621, %v1620
    %v1667 = vpack.c.b16 %v1623, %v1622
    %v1668 = vpack.c.b16 %v1625, %v1624
    %v1669 = vpack.c.b16 %v1627, %v1626
    %v1670 = vpack.c.b16 %v1629, %v1628
    %v1671 = vpack.c.b16 %v1631, %v1630
    %v1672 = vpack.c.b16 %v1633, %v1632
    %v1673 = vpack.c.b16 %v1635, %v1634
    %v1674 = vpack.c.b16 %v1637, %v1636
    %v1675 = vpack.c.b16 %v1639, %v1638
    %v1676 = vpack.c.b16 %v1641, %v1640
    %v1677 = vpack.c.b16 %v1643, %v1642
    %v1678 = vpack.c.b16 %v1645, %v1644
    %v1679 = vpack.c.b16 %v1647, %v1646
    %1712 = vmatpush.bf16.msra.mxu0 %v1655
    %1713 = vmatpush.bf16.msra.mxu0 %v1654
    %1714 = vmatpush.bf16.msra.mxu0 %v1653
    %1715 = vmatpush.bf16.msra.mxu0 %v1652
    %1716 = vmatpush.bf16.msra.mxu0 %v1651
    %1717 = vmatpush.bf16.msra.mxu0 %v1650
    %1718 = vmatpush.bf16.msra.mxu0 %v1649
    %1719 = vmatpush.bf16.msra.mxu0 %v1648
    %1720 = vmatmul.bf16.gmra.mxu0 %v1448
    %v1721 = vpop.f32.mrf.mxu0
    %v1722 = vadd.f32 %v1518, %v1721
    %v1723 = vpop.f32.mrf.mxu0
    %1724 = vdwg.mxu0
    %1725 = vmatpush.bf16.msra.mxu0 %v1663
    %1726 = vmatpush.bf16.msra.mxu0 %v1662
    %1727 = vmatpush.bf16.msra.mxu0 %v1661
    %1728 = vmatpush.bf16.msra.mxu0 %v1660
    %1729 = vmatpush.bf16.msra.mxu0 %v1659
    %1730 = vmatpush.bf16.msra.mxu0 %v1658
    %1731 = vmatpush.bf16.msra.mxu0 %v1657
    %1732 = vmatpush.bf16.msra.mxu0 %v1656
    %1733 = vmatmul.bf16.gmra.mxu0 %v1449
    %v1734 = vpop.f32.mrf.mxu0
    %v1735 = vadd.f32 %v1722, %v1734
    %v1736 = vpop.f32.mrf.mxu0
    %1737 = vdwg.mxu0
    %1738 = vmatpush.bf16.msra.mxu0 %v1671
    %1739 = vmatpush.bf16.msra.mxu0 %v1670
    %1740 = vmatpush.bf16.msra.mxu0 %v1669
    %1741 = vmatpush.bf16.msra.mxu0 %v1668
    %1742 = vmatpush.bf16.msra.mxu0 %v1667
    %1743 = vmatpush.bf16.msra.mxu0 %v1666
    %1744 = vmatpush.bf16.msra.mxu0 %v1665
    %1745 = vmatpush.bf16.msra.mxu0 %v1664
    %1746 = vmatmul.bf16.gmra.mxu0 %v1450
    %v1747 = vpop.f32.mrf.mxu0
    %v1748 = vadd.f32 %v1735, %v1747
    %v1749 = vpop.f32.mrf.mxu0
    %1750 = vdwg.mxu0
    %1751 = vmatpush.bf16.msra.mxu0 %v1679
    %1752 = vmatpush.bf16.msra.mxu0 %v1678
    %1753 = vmatpush.bf16.msra.mxu0 %v1677
    %1754 = vmatpush.bf16.msra.mxu0 %v1676
    %1755 = vmatpush.bf16.msra.mxu0 %v1675
    %1756 = vmatpush.bf16.msra.mxu0 %v1674
    %1757 = vmatpush.bf16.msra.mxu0 %v1673
    %1758 = vmatpush.bf16.msra.mxu0 %v1672
    %1759 = vmatmul.bf16.gmra.mxu0 %v1451
    %v1760 = vpop.f32.mrf.mxu0
    %v1761 = vadd.f32 %v1748, %v1760
    %v1762 = vpop.f32.mrf.mxu0
    %1763 = vdwg.mxu0
    %v1764 = vlaneseq
    %v1765 = vand.u32 %v1764, 127
    %vm1766 = vcmp.lt.s32.totalorder %v1765, 18
    %v1767 = vmul.f32 %v1761, 1.442695
    %v1768 = vpow.pop %v1767
    %v1769 = vadd.f32 %v1768, 1e-09
    %v1770 = vrsqrt.pop %v1769
    %v1771 = vmul.f32 %v1770, %v1769
    %v1772 = vmul.f32 %v1771, %v1770
    %v1773 = vmul.f32 0.5, %v1772
    %v1774 = vsub.f32 1.5, %v1773
    %v1775 = vmul.f32 %v1770, %v1774
    %v1776 = vmul.f32 %v1769, %v1775
    %vm1777 = vcmp.eq.f32.partialorder %v1769, inf
    %v1778 = vsel %vm1777, %v1769, %v1776
    %vm1779 = vcmp.eq.f32.partialorder %v1769, 0.0
    %v1780 = vand.u32 %v1769, 2147483648
    %v1781 = vsel %vm1779, %v1780, %v1778
    %v1782 = vsel %vm1766, %v1761, %v1781
    %vm1783 = vcmask 293888
    %1784 = vst.msk [vmem:[#allocation5] sm:$0xff] %vm1783, %v1782
    // Predicated region
    $region30: #{tpu_custom_call.1} parent=1 // pred_check
      _
    $region31: #{tpu_custom_call.1} parent=1 // pred_check_branch
      %1786 = sbr.rel (0) target = $region33
    $region32: #{tpu_custom_call.1} parent=1 // pred_region
      %1788 = vsyncadd [#allocation4], 0
      %s1790 = sshll.u32 [#allocation5], 4
      %s1791 = int_to_ptr.vmem [resolvable:$true] %s1790
      %s1792 = sshll.u32 %s6, 4
      %s1793 = int_to_ptr.hbm [resolvable:$true] %s1792
      %1795 = dma.vmem_to_hbm [thread:$0]  %s1791, 128, %s1793, [#allocation4]
    $region33: #{tpu_custom_call.1} parent=1 // pred_fallthru
      _
    // Predicated region
    $region34: #{tpu_custom_call.1} parent=1 // pred_check
      _
    $region35: #{tpu_custom_call.1} parent=1 // pred_check_branch
      %1797 = sbr.rel (0) target = $region37
    $region36: #{tpu_custom_call.1} parent=1 // pred_region
      %1799 = dma.done [#allocation4], 128
    $region37: #{tpu_custom_call.1} parent=1 // pred_fallthru
      _
    %1800 = vsyncpa [#allocation3], 1
    %1801 = vsyncpa [#allocation4], 1

</llo_original>
